<compile_context>
chip_gen: v5e
topology: v5e:2x2
jax: 0.10.0
libtpu: 0.0.40
codegen_flags: <defaults>
</compile_context>

<pallas_src>
import jax
import jax.numpy as jnp
from jax.experimental import pallas as pl
from jax.experimental.pallas import tpu as pltpu


# ------------------------------- kernel body --------------------------------


def _sine_kernel(w0_ref, x_ref, o_ref):
    # w0 lives in SMEM; one scalar load per block.
    w0 = w0_ref[0]
    x = x_ref[...]
    # Math in f32 (no-op for f32 inputs, keeps bf16/f16 accuracy); cast back on store.
    o_ref[...] = jnp.sin(w0 * x.astype(jnp.float32)).astype(o_ref.dtype)


# ------------------------------ tiling helpers -------------------------------

_SMALL_BYTES = 512 * 1024            # below this: one whole-array block, native shape
_MAX_NATIVE_COLS = 65536             # widest native lane dim kept un-tiled along cols
_PER_BUFFER_BYTES = 4 * 1024 * 1024  # ~4 MiB/buffer (in+out double-buffered = ~16 MiB)
_VMEM_LIMIT_BYTES = 32 * 1024 * 1024


def _sublane_pack(dtype):
    # Minimal sublane packing per dtype width: f32 -> 8, bf16/f16 -> 16, 8-bit -> 32.
    itemsize = jnp.dtype(dtype).itemsize
    return {4: 8, 2: 16, 1: 32}.get(itemsize, 8)


def _per_buffer_bytes():
    per_buf = _PER_BUFFER_BYTES
    try:
        vmem = pltpu.get_tpu_info().vmem_capacity_bytes
        per_buf = max(512 * 1024, min(per_buf, vmem // 16))
    except Exception:
        pass
    return per_buf


def _sine_single_block(x, w0_arr):
    # Whole array in a single VMEM block at its native shape: no reshapes, no grid.
    return pl.pallas_call(
        _sine_kernel,
        out_shape=jax.ShapeDtypeStruct(x.shape, x.dtype),
        in_specs=[pl.BlockSpec(memory_space=pltpu.MemorySpace.SMEM),
                  pl.BlockSpec(memory_space=pltpu.MemorySpace.VMEM)],
        out_specs=pl.BlockSpec(memory_space=pltpu.MemorySpace.VMEM),
    )(w0_arr, x)


def _sine_tiled_2d(x2d, w0_arr):
    rows, cols = x2d.shape
    itemsize = jnp.dtype(x2d.dtype).itemsize
    sub = _sublane_pack(x2d.dtype)

    per_buf = _per_buffer_bytes()
    tr = max(sub, per_buf // (itemsize * cols))
    tr = min(tr, rows)
    # Guarantee the row grid splits across TensorCores (v7x megacore): aim for
    # at least ~4 row blocks whenever the row count allows it.
    if rows >= 4 * sub and pl.cdiv(rows, tr) < 4:
        tr = pl.cdiv(rows, 4)
    tr = max(sub, (tr // sub) * sub)   # keep sublane-packed tiles
    tr = min(tr, rows)

    grid = (pl.cdiv(rows, tr),)
    return pl.pallas_call(
        _sine_kernel,
        out_shape=jax.ShapeDtypeStruct((rows, cols), x2d.dtype),
        grid_spec=pltpu.PrefetchScalarGridSpec(
            num_scalar_prefetch=0,
            grid=grid,
            in_specs=[pl.BlockSpec(memory_space=pltpu.MemorySpace.SMEM),
                      pl.BlockSpec((tr, cols), lambda i: (i, 0))],
            out_specs=pl.BlockSpec((tr, cols), lambda i: (i, 0)),
        ),
        compiler_params=pltpu.CompilerParams(
            dimension_semantics=("parallel",),
            vmem_limit_bytes=_VMEM_LIMIT_BYTES,
        ),
    )(w0_arr, x2d)


# --------------------------------- wrapper -----------------------------------


def sine(x, w0=1.0):
    """y = sin(w0 * x), elementwise, any shape / float dtype (PyTorch Sine.forward)."""
    x = jnp.asarray(x)
    orig_shape = x.shape
    n = x.size
    if n == 0 or x.ndim == 0:
        return jnp.sin(jnp.asarray(w0, jnp.float32) * x.astype(jnp.float32)).astype(x.dtype)

    w0_arr = jnp.asarray(w0, dtype=jnp.float32).reshape((1,))
    itemsize = jnp.dtype(x.dtype).itemsize

    # Small arrays: one whole-array block at the native shape (no reshapes at all).
    if n * itemsize <= _SMALL_BYTES:
        return _sine_single_block(x, w0_arr)

    # Lane-friendly native trailing dim: collapse only the leading dims (cheap).
    if x.ndim >= 2 and orig_shape[-1] % 128 == 0 and orig_shape[-1] <= _MAX_NATIVE_COLS:
        cols = orig_shape[-1]
        out2d = _sine_tiled_2d(x.reshape(n // cols, cols), w0_arr)
        return out2d.reshape(orig_shape)

    # Fallback: flatten.  Prefer a wide lane-dense column count that divides n exactly;
    # otherwise run the kernel on the aligned bulk and finish the <cols tail with a
    # tiny jnp.sin (no full-array pad pass, no full-array output slice).
    flat = x.reshape(-1)
    for c in (8192, 4096, 2048, 1024, 512, 256, 128):
        if n % c == 0:
            out = _sine_tiled_2d(flat.reshape(n // c, c), w0_arr)
            return out.reshape(orig_shape)

    cols = 1024 if n >= 1024 else 128
    n_main = (n // cols) * cols
    if n_main == 0:  # defensive; unreachable given the small-array path above
        return jnp.sin(w0_arr[0] * flat.astype(jnp.float32)).astype(x.dtype).reshape(orig_shape)
    bulk = _sine_tiled_2d(flat[:n_main].reshape(n_main // cols, cols), w0_arr).reshape(-1)
    tail = jnp.sin(w0_arr[0] * flat[n_main:].astype(jnp.float32)).astype(x.dtype)
    return jnp.concatenate([bulk, tail]).reshape(orig_shape)


# ----------------------------------- test ------------------------------------


if __name__ == "__main__":
    key = jax.random.PRNGKey(0)
    # Small NCHW-like input consistent with a typical regressor activation.
    x = jax.random.normal(key, (2, 4, 16, 16), dtype=jnp.float32)
    w0 = 30.0  # SIREN-style frequency; module default is 1.0 but any w0 works.

    y = jax.block_until_ready(sine(x, w0=w0))
    ref = jnp.sin(w0 * x)
    assert y.shape == x.shape and y.dtype == x.dtype
    assert jnp.allclose(y, ref, atol=1e-5, rtol=1e-5), "mismatch vs reference (small path)"

    # Tiled 2-D path (native lane-dense trailing dim, multi-block row grid).
    x2 = jax.random.normal(jax.random.PRNGKey(1), (256, 1024), dtype=jnp.float32)
    y2 = jax.block_until_ready(sine(x2, w0=2.0))
    assert jnp.allclose(y2, jnp.sin(2.0 * x2), atol=1e-5, rtol=1e-5), "mismatch (tiled path)"

    # Ragged fallback path (element count not a multiple of 128 -> bulk kernel + tiny tail).
    x3 = jax.random.normal(jax.random.PRNGKey(2), (4, 171, 257), dtype=jnp.float32)
    y3 = jax.block_until_ready(sine(x3, w0=0.5))
    assert jnp.allclose(y3, jnp.sin(0.5 * x3), atol=1e-5, rtol=1e-5), "mismatch (ragged path)"

    print("KERNEL_OK")
</pallas_src>

<mosaic_0001>
module attributes {stable_mosaic.version = 11 : i64} {
  func.func @_sine_kernel(%arg0: memref<1xf32, #tpu.memory_space<smem>>, %arg1: memref<2x4x16x16xf32, #tpu.memory_space<vmem>>, %arg2: memref<2x4x16x16xf32, #tpu.memory_space<vmem>>) attributes {dimension_semantics = [], scalar_prefetch = 0 : i64, scratch_operands = 0 : i64, tpu.core_type = #tpu.core_type<tc>} {
    %c0 = arith.constant 0 : index
    %0 = memref.load %arg0[%c0] : memref<1xf32, #tpu.memory_space<smem>>
    %c0_0 = arith.constant 0 : index
    %c0_1 = arith.constant 0 : index
    %c0_2 = arith.constant 0 : index
    %c0_3 = arith.constant 0 : index
    %1 = vector.load %arg1[%c0_0, %c0_1, %c0_2, %c0_3] : memref<2x4x16x16xf32, #tpu.memory_space<vmem>>, vector<2x4x16x16xf32>
    %2 = vector.broadcast %0 : f32 to vector<2x4x16x16xf32>
    %3 = arith.mulf %2, %1 : vector<2x4x16x16xf32>
    %4 = math.sin %3 : vector<2x4x16x16xf32>
    %c0_4 = arith.constant 0 : index
    %c0_5 = arith.constant 0 : index
    %c0_6 = arith.constant 0 : index
    %c0_7 = arith.constant 0 : index
    %5 = vector.load %arg2[%c0_4, %c0_5, %c0_6, %c0_7] : memref<2x4x16x16xf32, #tpu.memory_space<vmem>>, vector<2x4x16x16xf32>
    tpu.vector_store %arg2[%c0_4, %c0_5, %c0_6, %c0_7], %4 {strides = array<i32>} : memref<2x4x16x16xf32, #tpu.memory_space<vmem>>, vector<2x4x16x16xf32>,
    return
  }
}

</mosaic_0001>

<llo_original>
// kernel: tpu_custom_call.1
$region0: #{tpu_custom_call.1}
  #allocation0 [shape = 'u32[]', space=smem, size = 0x4, offset = 0x4, fixed_abs, tag = 'smem constant byte address 0x4 - core index']
  #allocation1 [shape = 'u32[72,128]{1,0:T(1,128)}', space=vmem, size = 0x9000, scoped, tag = 'internal scratch']
  #allocation2 [shape = 'f32[1]{0:T(128)S(6)}', space=smem, size = 0x200, scoped, tag = 'scoped memory for tpu_custom_call.1']
  %s0 = inlined_call_operand.<no memory space> [shape: f32[1], index: 0, kind: input, shape index: {}]
  %s1 = inlined_call_operand.hbm [shape: f32[2,4,16,16], index: 1, kind: input, shape index: {}]
  %s2 = inlined_call_operand.hbm [shape: f32[2,4,16,16], index: 2, kind: output, shape index: {}]
  %s3 = sld [smem:[#allocation0]]
  $region22: #{tpu_custom_call.1} parent=0
    _
  %s5 = ssub.s32 1, %s3
  %s6 = scalar_select 0, %s5, %s3
  %7 = sst [smem:[#allocation2]] %s0
  $region1: #{tpu_custom_call.1} parent=0
    #allocation3 [shape = 'u8[65536]{0}', space=vmem, size = 0x10000, scoped, tag = 'input window, operand 1, single buffered']
    #allocation4 [shape = 's32[1]{0}', space=sflag, size = 0x4, scoped, tag = 'scoped memory for tpu_custom_call.1']
    #allocation5 [shape = 's32[1]{0}', space=sflag, size = 0x4, scoped, tag = 'scoped memory for tpu_custom_call.1']
    #allocation6 [shape = 'u8[65536]{0}', space=vmem, size = 0x10000, scoped, tag = 'output window, operand 0, single buffered']
    %8 = vsyncpa [#allocation4], 0
    %9 = vsyncpa [#allocation5], 0
    // Predicated region
    $region2: #{tpu_custom_call.1} parent=1 // pred_check
      _
    $region3: #{tpu_custom_call.1} parent=1 // pred_check_branch
      %11 = sbr.rel (0) target = $region5
    $region4: #{tpu_custom_call.1} parent=1 // pred_region
      _
    $region5: #{tpu_custom_call.1} parent=1 // pred_fallthru
      _
    // Predicated region
    $region6: #{tpu_custom_call.1} parent=1 // pred_check
      _
    $region7: #{tpu_custom_call.1} parent=1 // pred_check_branch
      %13 = sbr.rel (0) target = $region9
    $region8: #{tpu_custom_call.1} parent=1 // pred_region
      %15 = vsyncadd [#allocation4], 0
      %s16 = sshll.u32 %s1, 4
      %s17 = int_to_ptr.hbm [resolvable:$true] %s16
      %s18 = sshll.u32 [#allocation3], 4
      %s19 = int_to_ptr.vmem [resolvable:$true] %s18
      %24 = dma.hbm_to_vmem [thread:$0]  %s17, 2048, %s19, [#allocation4], 128, 128, 8
    $region9: #{tpu_custom_call.1} parent=1 // pred_fallthru
      _
    // Predicated region
    $region10: #{tpu_custom_call.1} parent=1 // pred_check
      _
    $region11: #{tpu_custom_call.1} parent=1 // pred_check_branch
      %26 = sbr.rel (0) target = $region13
    $region12: #{tpu_custom_call.1} parent=1 // pred_region
      %28 = dma.done [#allocation4], 2048
    $region13: #{tpu_custom_call.1} parent=1 // pred_fallthru
      _
    %s29 = sld [smem:[#allocation2]]
    %v30 = vld [vmem:[#allocation3] sm:$0xff]
    %v31 = vld [vmem:[#allocation3 + $0x8] sm:$0xff]
    %v32 = vld [vmem:[#allocation3 + $0x10] sm:$0xff]
    %v33 = vld [vmem:[#allocation3 + $0x18] sm:$0xff]
    %v34 = vld [vmem:[#allocation3 + $0x20] sm:$0xff]
    %v35 = vld [vmem:[#allocation3 + $0x28] sm:$0xff]
    %v36 = vld [vmem:[#allocation3 + $0x30] sm:$0xff]
    %v37 = vld [vmem:[#allocation3 + $0x38] sm:$0xff]
    %v38 = vld [vmem:[#allocation3 + $0x40] sm:$0xff]
    %v39 = vld [vmem:[#allocation3 + $0x48] sm:$0xff]
    %v40 = vld [vmem:[#allocation3 + $0x50] sm:$0xff]
    %v41 = vld [vmem:[#allocation3 + $0x58] sm:$0xff]
    %v42 = vld [vmem:[#allocation3 + $0x60] sm:$0xff]
    %v43 = vld [vmem:[#allocation3 + $0x68] sm:$0xff]
    %v44 = vld [vmem:[#allocation3 + $0x70] sm:$0xff]
    %v45 = vld [vmem:[#allocation3 + $0x78] sm:$0xff]
    %v46 = vstv %s29
    %v47 = vmul.f32 %v46, %v30
    %v48 = vmul.f32 %v46, %v31
    %v49 = vmul.f32 %v46, %v32
    %v50 = vmul.f32 %v46, %v33
    %v51 = vmul.f32 %v46, %v34
    %v52 = vmul.f32 %v46, %v35
    %v53 = vmul.f32 %v46, %v36
    %v54 = vmul.f32 %v46, %v37
    %v55 = vmul.f32 %v46, %v38
    %v56 = vmul.f32 %v46, %v39
    %v57 = vmul.f32 %v46, %v40
    %v58 = vmul.f32 %v46, %v41
    %v59 = vmul.f32 %v46, %v42
    %v60 = vmul.f32 %v46, %v43
    %v61 = vmul.f32 %v46, %v44
    %v62 = vmul.f32 %v46, %v45
    %v63 = vand.u32 2147483647, %v47
    %vm64 = vcmp.le.f32.partialorder %v63, 0.7853982
    %vm65 = vcmp.lt.s32.totalorder %v47, 0
    %v66 = vand.u32 %v47, 2139095040
    %v67 = vshrl.u32 %v66, 23
    %v68 = vsub.s32 %v67, 127
    %v69 = vand.u32 2147483647, %v47
    %v70 = vand.u32 %v69, 8388607
    %v71 = vor.u32 %v70, 8388608
    %v72 = vsub.s32 0, %v71
    %v73 = vadd.s32 %v68, 1
    %vm74 = vcmp.gt.s32.totalorder %v73, 0
    %v75 = vsel %vm74, %v73, 0
    %v76 = vshrl.u32 %v75, 5
    %v77 = vand.u32 %v75, 31
    %v78 = vsub.s32 32, %v77
    %v79 = vshrl.u32 683565275, %v78
    %v80 = vshll.u32 683565275, %v77
    %v81 = vshrl.u32 2475754826, %v78
    %v82 = vor.u32 %v80, %v81
    %v83 = vshll.u32 2475754826, %v77
    %v84 = vshrl.u32 2131351028, %v78
    %v85 = vor.u32 %v83, %v84
    %v86 = vshll.u32 2131351028, %v77
    %v87 = vshrl.u32 2102212464, %v78
    %v88 = vor.u32 %v86, %v87
    %v89 = vshll.u32 2102212464, %v77
    %v90 = vshrl.u32 920167782, %v78
    %v91 = vor.u32 %v89, %v90
    %v92 = vshll.u32 920167782, %v77
    %v93 = vshrl.u32 1326507024, %v78
    %v94 = vor.u32 %v92, %v93
    %vm95 = vcmp.lt.s32.totalorder %v76, 1
    %vm96 = vcmp.lt.s32.totalorder %v76, 2
    %vm97 = vcmp.lt.s32.totalorder %v76, 3
    %vm98 = vcmp.lt.s32.totalorder %v76, 4
    %v99 = vsel %vm95, %v79, %v82
    %v100 = vsel %vm98, %v88, 2102212464
    %v101 = vsel %vm97, %v85, %v100
    %v102 = vsel %vm96, %v99, %v101
    %v103 = vsel %vm95, %v82, %v85
    %v104 = vsel %vm98, %v91, 920167782
    %v105 = vsel %vm97, %v88, %v104
    %v106 = vsel %vm96, %v103, %v105
    %v107 = vsel %vm95, %v85, %v88
    %v108 = vsel %vm98, %v94, 1326507024
    %v109 = vsel %vm97, %v91, %v108
    %v110 = vsel %vm96, %v107, %v109
    %v111 = vshll.u32 %v71, 8
    %v112 = vand.u32 %v111, 65535
    %v113 = vshrl.u32 %v111, 16
    %v114 = vand.u32 %v110, 65535
    %v115 = vshrl.u32 %v110, 16
    %v116 = vmul.u32 %v112, %v114
    %v117 = vmul.u32 %v112, %v115
    %v118 = vmul.u32 %v113, %v114
    %v119 = vmul.u32 %v113, %v115
    %v120 = vshll.u32 %v117, 16
    %v121 = vshrl.u32 %v117, 16
    %v122 = vshll.u32 %v118, 16
    %v123 = vshrl.u32 %v118, 16
    %vm124 = vc.u32 %v116, %v120
    %v125 = vsel %vm124, 1, 0
    %v126 = vadd.s32 %v116, %v120
    %v127 = vadd.s32 %v119, %v125
    %vm128 = vc.u32 %v126, %v122
    %v129 = vsel %vm128, 1, 0
    %v130 = vadd.s32 %v126, %v122
    %v131 = vadd.s32 %v127, %v129
    %v132 = vadd.s32 %v131, %v121
    %v133 = vadd.s32 %v132, %v123
    %v134 = vand.u32 %v111, 65535
    %v135 = vshrl.u32 %v111, 16
    %v136 = vand.u32 %v106, 65535
    %v137 = vshrl.u32 %v106, 16
    %v138 = vmul.u32 %v134, %v136
    %v139 = vmul.u32 %v134, %v137
    %v140 = vmul.u32 %v135, %v136
    %v141 = vmul.u32 %v135, %v137
    %v142 = vshll.u32 %v139, 16
    %v143 = vshrl.u32 %v139, 16
    %v144 = vshll.u32 %v140, 16
    %v145 = vshrl.u32 %v140, 16
    %vm146 = vc.u32 %v138, %v142
    %v147 = vsel %vm146, 1, 0
    %v148 = vadd.s32 %v138, %v142
    %v149 = vadd.s32 %v141, %v147
    %vm150 = vc.u32 %v148, %v144
    %v151 = vsel %vm150, 1, 0
    %v152 = vadd.s32 %v148, %v144
    %v153 = vadd.s32 %v149, %v151
    %v154 = vadd.s32 %v153, %v143
    %v155 = vadd.s32 %v154, %v145
    %v156 = vmul.u32 %v111, %v102
    %v157 = vadd.s32 %v133, %v152
    %vm158 = vc.u32 %v133, %v152
    %v159 = vadd.s32 %v155, 1
    %v160 = vsel %vm158, %v159, %v155
    %v161 = vadd.s32 %v156, %v160
    %v162 = vadd.s32 %v161, 536870912
    %v163 = vshrl.u32 %v162, 30
    %v164 = vshll.u32 %v163, 30
    %v165 = vsub.s32 %v161, %v164
    %vm166 = vcmp.lt.s32.totalorder %v165, 0
    %v167 = vsub.s32 0, %v165
    %v168 = vsel %vm166, %v167, %v165
    %v169 = vclz %v168
    %v170 = vsub.s32 %v169, 2
    %vm171 = vcmp.gt.s32.totalorder 0, %v170
    %v172 = vsel %vm171, 0, %v170
    %v173 = vsub.s32 32, %v172
    %v174 = vshll.u32 %v165, %v172
    %v175 = vshrl.u32 %v157, %v173
    %v176 = vor.u32 %v174, %v175
    %v177 = vsub.s32 4294967266, %v172
    %v178 = vadd.s32 %v177, 127
    %v179 = vshll.u32 %v178, 23
    %v180 = vor.u32 4788187, %v179
    %v181 = vand.u32 2147483647, %v180
    %v183 = vcvt.s32.f32 %v176
    %v184 = vmul.f32 %v183, %v181
    %v185 = vxor.u32 %v184, 2147483648
    %v186 = vsel %vm65, %v185, %v184
    %v187 = vsub.s32 4, %v163
    %v188 = vsel %vm65, %v187, %v163
    %v189 = vsel %vm64, %v47, %v186
    %v190 = vsel %vm64, 0, %v188
    %v191 = vmul.f32 %v189, %v189
    %v192 = vmul.f32 %v191, -0.001358992
    %v193 = vadd.f32 %v192, 0.041655596
    %v194 = vmul.f32 %v191, %v193
    %v195 = vadd.f32 %v194, -0.4999988
    %v196 = vmul.f32 %v191, %v195
    %v197 = vadd.f32 1.0, %v196
    %v198 = vmul.f32 %v189, %v189
    %v199 = vmul.f32 %v198, -0.00019511016
    %v200 = vadd.f32 %v199, 0.008332121
    %v201 = vmul.f32 %v198, %v200
    %v202 = vadd.f32 %v201, -0.16666654
    %v203 = vmul.f32 %v198, %v202
    %v204 = vadd.f32 %v203, 1.0
    %v205 = vmul.f32 %v204, %v189
    %vm206 = vweird.f32 %v47
    %v207 = vadd.s32 %v190, 3
    %v208 = vand.u32 %v207, 3
    %vm209 = vcmp.lt.s32.totalorder %v208, 2
    %vm210 = vcmp.eq.s32.totalorder %v208, 0
    %v211 = vxor.u32 %v205, 2147483648
    %v212 = vsel %vm210, %v197, %v211
    %vm213 = vcmp.eq.s32.totalorder %v208, 2
    %v214 = vxor.u32 %v197, 2147483648
    %v215 = vsel %vm213, %v214, %v205
    %v216 = vsel %vm209, %v212, %v215
    %v217 = vsel %vm206, nan, %v216
    %v218 = vand.u32 2147483647, %v48
    %vm219 = vcmp.le.f32.partialorder %v218, 0.7853982
    %vm220 = vcmp.lt.s32.totalorder %v48, 0
    %v221 = vand.u32 %v48, 2139095040
    %v222 = vshrl.u32 %v221, 23
    %v223 = vsub.s32 %v222, 127
    %v224 = vand.u32 2147483647, %v48
    %v225 = vand.u32 %v224, 8388607
    %v226 = vor.u32 %v225, 8388608
    %v227 = vsub.s32 0, %v226
    %v228 = vadd.s32 %v223, 1
    %vm229 = vcmp.gt.s32.totalorder %v228, 0
    %v230 = vsel %vm229, %v228, 0
    %v231 = vshrl.u32 %v230, 5
    %v232 = vand.u32 %v230, 31
    %v233 = vsub.s32 32, %v232
    %v234 = vshrl.u32 683565275, %v233
    %v235 = vshll.u32 683565275, %v232
    %v236 = vshrl.u32 2475754826, %v233
    %v237 = vor.u32 %v235, %v236
    %v238 = vshll.u32 2475754826, %v232
    %v239 = vshrl.u32 2131351028, %v233
    %v240 = vor.u32 %v238, %v239
    %v241 = vshll.u32 2131351028, %v232
    %v242 = vshrl.u32 2102212464, %v233
    %v243 = vor.u32 %v241, %v242
    %v244 = vshll.u32 2102212464, %v232
    %v245 = vshrl.u32 920167782, %v233
    %v246 = vor.u32 %v244, %v245
    %v247 = vshll.u32 920167782, %v232
    %v248 = vshrl.u32 1326507024, %v233
    %v249 = vor.u32 %v247, %v248
    %vm250 = vcmp.lt.s32.totalorder %v231, 1
    %vm251 = vcmp.lt.s32.totalorder %v231, 2
    %vm252 = vcmp.lt.s32.totalorder %v231, 3
    %vm253 = vcmp.lt.s32.totalorder %v231, 4
    %v254 = vsel %vm250, %v234, %v237
    %v255 = vsel %vm253, %v243, 2102212464
    %v256 = vsel %vm252, %v240, %v255
    %v257 = vsel %vm251, %v254, %v256
    %v258 = vsel %vm250, %v237, %v240
    %v259 = vsel %vm253, %v246, 920167782
    %v260 = vsel %vm252, %v243, %v259
    %v261 = vsel %vm251, %v258, %v260
    %v262 = vsel %vm250, %v240, %v243
    %v263 = vsel %vm253, %v249, 1326507024
    %v264 = vsel %vm252, %v246, %v263
    %v265 = vsel %vm251, %v262, %v264
    %v266 = vshll.u32 %v226, 8
    %v267 = vand.u32 %v266, 65535
    %v268 = vshrl.u32 %v266, 16
    %v269 = vand.u32 %v265, 65535
    %v270 = vshrl.u32 %v265, 16
    %v271 = vmul.u32 %v267, %v269
    %v272 = vmul.u32 %v267, %v270
    %v273 = vmul.u32 %v268, %v269
    %v274 = vmul.u32 %v268, %v270
    %v275 = vshll.u32 %v272, 16
    %v276 = vshrl.u32 %v272, 16
    %v277 = vshll.u32 %v273, 16
    %v278 = vshrl.u32 %v273, 16
    %vm279 = vc.u32 %v271, %v275
    %v280 = vsel %vm279, 1, 0
    %v281 = vadd.s32 %v271, %v275
    %v282 = vadd.s32 %v274, %v280
    %vm283 = vc.u32 %v281, %v277
    %v284 = vsel %vm283, 1, 0
    %v285 = vadd.s32 %v281, %v277
    %v286 = vadd.s32 %v282, %v284
    %v287 = vadd.s32 %v286, %v276
    %v288 = vadd.s32 %v287, %v278
    %v289 = vand.u32 %v266, 65535
    %v290 = vshrl.u32 %v266, 16
    %v291 = vand.u32 %v261, 65535
    %v292 = vshrl.u32 %v261, 16
    %v293 = vmul.u32 %v289, %v291
    %v294 = vmul.u32 %v289, %v292
    %v295 = vmul.u32 %v290, %v291
    %v296 = vmul.u32 %v290, %v292
    %v297 = vshll.u32 %v294, 16
    %v298 = vshrl.u32 %v294, 16
    %v299 = vshll.u32 %v295, 16
    %v300 = vshrl.u32 %v295, 16
    %vm301 = vc.u32 %v293, %v297
    %v302 = vsel %vm301, 1, 0
    %v303 = vadd.s32 %v293, %v297
    %v304 = vadd.s32 %v296, %v302
    %vm305 = vc.u32 %v303, %v299
    %v306 = vsel %vm305, 1, 0
    %v307 = vadd.s32 %v303, %v299
    %v308 = vadd.s32 %v304, %v306
    %v309 = vadd.s32 %v308, %v298
    %v310 = vadd.s32 %v309, %v300
    %v311 = vmul.u32 %v266, %v257
    %v312 = vadd.s32 %v288, %v307
    %vm313 = vc.u32 %v288, %v307
    %v314 = vadd.s32 %v310, 1
    %v315 = vsel %vm313, %v314, %v310
    %v316 = vadd.s32 %v311, %v315
    %v317 = vadd.s32 %v316, 536870912
    %v318 = vshrl.u32 %v317, 30
    %v319 = vshll.u32 %v318, 30
    %v320 = vsub.s32 %v316, %v319
    %vm321 = vcmp.lt.s32.totalorder %v320, 0
    %v322 = vsub.s32 0, %v320
    %v323 = vsel %vm321, %v322, %v320
    %v324 = vclz %v323
    %v325 = vsub.s32 %v324, 2
    %vm326 = vcmp.gt.s32.totalorder 0, %v325
    %v327 = vsel %vm326, 0, %v325
    %v328 = vsub.s32 32, %v327
    %v329 = vshll.u32 %v320, %v327
    %v330 = vshrl.u32 %v312, %v328
    %v331 = vor.u32 %v329, %v330
    %v332 = vsub.s32 4294967266, %v327
    %v333 = vadd.s32 %v332, 127
    %v334 = vshll.u32 %v333, 23
    %v335 = vor.u32 4788187, %v334
    %v336 = vand.u32 2147483647, %v335
    %v338 = vcvt.s32.f32 %v331
    %v339 = vmul.f32 %v338, %v336
    %v340 = vxor.u32 %v339, 2147483648
    %v341 = vsel %vm220, %v340, %v339
    %v342 = vsub.s32 4, %v318
    %v343 = vsel %vm220, %v342, %v318
    %v344 = vsel %vm219, %v48, %v341
    %v345 = vsel %vm219, 0, %v343
    %v346 = vmul.f32 %v344, %v344
    %v347 = vmul.f32 %v346, -0.001358992
    %v348 = vadd.f32 %v347, 0.041655596
    %v349 = vmul.f32 %v346, %v348
    %v350 = vadd.f32 %v349, -0.4999988
    %v351 = vmul.f32 %v346, %v350
    %v352 = vadd.f32 1.0, %v351
    %v353 = vmul.f32 %v344, %v344
    %v354 = vmul.f32 %v353, -0.00019511016
    %v355 = vadd.f32 %v354, 0.008332121
    %v356 = vmul.f32 %v353, %v355
    %v357 = vadd.f32 %v356, -0.16666654
    %v358 = vmul.f32 %v353, %v357
    %v359 = vadd.f32 %v358, 1.0
    %v360 = vmul.f32 %v359, %v344
    %vm361 = vweird.f32 %v48
    %v362 = vadd.s32 %v345, 3
    %v363 = vand.u32 %v362, 3
    %vm364 = vcmp.lt.s32.totalorder %v363, 2
    %vm365 = vcmp.eq.s32.totalorder %v363, 0
    %v366 = vxor.u32 %v360, 2147483648
    %v367 = vsel %vm365, %v352, %v366
    %vm368 = vcmp.eq.s32.totalorder %v363, 2
    %v369 = vxor.u32 %v352, 2147483648
    %v370 = vsel %vm368, %v369, %v360
    %v371 = vsel %vm364, %v367, %v370
    %v372 = vsel %vm361, nan, %v371
    %v373 = vand.u32 2147483647, %v49
    %vm374 = vcmp.le.f32.partialorder %v373, 0.7853982
    %vm375 = vcmp.lt.s32.totalorder %v49, 0
    %v376 = vand.u32 %v49, 2139095040
    %v377 = vshrl.u32 %v376, 23
    %v378 = vsub.s32 %v377, 127
    %v379 = vand.u32 2147483647, %v49
    %v380 = vand.u32 %v379, 8388607
    %v381 = vor.u32 %v380, 8388608
    %v382 = vsub.s32 0, %v381
    %v383 = vadd.s32 %v378, 1
    %vm384 = vcmp.gt.s32.totalorder %v383, 0
    %v385 = vsel %vm384, %v383, 0
    %v386 = vshrl.u32 %v385, 5
    %v387 = vand.u32 %v385, 31
    %v388 = vsub.s32 32, %v387
    %v389 = vshrl.u32 683565275, %v388
    %v390 = vshll.u32 683565275, %v387
    %v391 = vshrl.u32 2475754826, %v388
    %v392 = vor.u32 %v390, %v391
    %v393 = vshll.u32 2475754826, %v387
    %v394 = vshrl.u32 2131351028, %v388
    %v395 = vor.u32 %v393, %v394
    %v396 = vshll.u32 2131351028, %v387
    %v397 = vshrl.u32 2102212464, %v388
    %v398 = vor.u32 %v396, %v397
    %v399 = vshll.u32 2102212464, %v387
    %v400 = vshrl.u32 920167782, %v388
    %v401 = vor.u32 %v399, %v400
    %v402 = vshll.u32 920167782, %v387
    %v403 = vshrl.u32 1326507024, %v388
    %v404 = vor.u32 %v402, %v403
    %vm405 = vcmp.lt.s32.totalorder %v386, 1
    %vm406 = vcmp.lt.s32.totalorder %v386, 2
    %vm407 = vcmp.lt.s32.totalorder %v386, 3
    %vm408 = vcmp.lt.s32.totalorder %v386, 4
    %v409 = vsel %vm405, %v389, %v392
    %v410 = vsel %vm408, %v398, 2102212464
    %v411 = vsel %vm407, %v395, %v410
    %v412 = vsel %vm406, %v409, %v411
    %v413 = vsel %vm405, %v392, %v395
    %v414 = vsel %vm408, %v401, 920167782
    %v415 = vsel %vm407, %v398, %v414
    %v416 = vsel %vm406, %v413, %v415
    %v417 = vsel %vm405, %v395, %v398
    %v418 = vsel %vm408, %v404, 1326507024
    %v419 = vsel %vm407, %v401, %v418
    %v420 = vsel %vm406, %v417, %v419
    %v421 = vshll.u32 %v381, 8
    %v422 = vand.u32 %v421, 65535
    %v423 = vshrl.u32 %v421, 16
    %v424 = vand.u32 %v420, 65535
    %v425 = vshrl.u32 %v420, 16
    %v426 = vmul.u32 %v422, %v424
    %v427 = vmul.u32 %v422, %v425
    %v428 = vmul.u32 %v423, %v424
    %v429 = vmul.u32 %v423, %v425
    %v430 = vshll.u32 %v427, 16
    %v431 = vshrl.u32 %v427, 16
    %v432 = vshll.u32 %v428, 16
    %v433 = vshrl.u32 %v428, 16
    %vm434 = vc.u32 %v426, %v430
    %v435 = vsel %vm434, 1, 0
    %v436 = vadd.s32 %v426, %v430
    %v437 = vadd.s32 %v429, %v435
    %vm438 = vc.u32 %v436, %v432
    %v439 = vsel %vm438, 1, 0
    %v440 = vadd.s32 %v436, %v432
    %v441 = vadd.s32 %v437, %v439
    %v442 = vadd.s32 %v441, %v431
    %v443 = vadd.s32 %v442, %v433
    %v444 = vand.u32 %v421, 65535
    %v445 = vshrl.u32 %v421, 16
    %v446 = vand.u32 %v416, 65535
    %v447 = vshrl.u32 %v416, 16
    %v448 = vmul.u32 %v444, %v446
    %v449 = vmul.u32 %v444, %v447
    %v450 = vmul.u32 %v445, %v446
    %v451 = vmul.u32 %v445, %v447
    %v452 = vshll.u32 %v449, 16
    %v453 = vshrl.u32 %v449, 16
    %v454 = vshll.u32 %v450, 16
    %v455 = vshrl.u32 %v450, 16
    %vm456 = vc.u32 %v448, %v452
    %v457 = vsel %vm456, 1, 0
    %v458 = vadd.s32 %v448, %v452
    %v459 = vadd.s32 %v451, %v457
    %vm460 = vc.u32 %v458, %v454
    %v461 = vsel %vm460, 1, 0
    %v462 = vadd.s32 %v458, %v454
    %v463 = vadd.s32 %v459, %v461
    %v464 = vadd.s32 %v463, %v453
    %v465 = vadd.s32 %v464, %v455
    %v466 = vmul.u32 %v421, %v412
    %v467 = vadd.s32 %v443, %v462
    %vm468 = vc.u32 %v443, %v462
    %v469 = vadd.s32 %v465, 1
    %v470 = vsel %vm468, %v469, %v465
    %v471 = vadd.s32 %v466, %v470
    %v472 = vadd.s32 %v471, 536870912
    %v473 = vshrl.u32 %v472, 30
    %v474 = vshll.u32 %v473, 30
    %v475 = vsub.s32 %v471, %v474
    %vm476 = vcmp.lt.s32.totalorder %v475, 0
    %v477 = vsub.s32 0, %v475
    %v478 = vsel %vm476, %v477, %v475
    %v479 = vclz %v478
    %v480 = vsub.s32 %v479, 2
    %vm481 = vcmp.gt.s32.totalorder 0, %v480
    %v482 = vsel %vm481, 0, %v480
    %v483 = vsub.s32 32, %v482
    %v484 = vshll.u32 %v475, %v482
    %v485 = vshrl.u32 %v467, %v483
    %v486 = vor.u32 %v484, %v485
    %v487 = vsub.s32 4294967266, %v482
    %v488 = vadd.s32 %v487, 127
    %v489 = vshll.u32 %v488, 23
    %v490 = vor.u32 4788187, %v489
    %v491 = vand.u32 2147483647, %v490
    %v493 = vcvt.s32.f32 %v486
    %v494 = vmul.f32 %v493, %v491
    %v495 = vxor.u32 %v494, 2147483648
    %v496 = vsel %vm375, %v495, %v494
    %v497 = vsub.s32 4, %v473
    %v498 = vsel %vm375, %v497, %v473
    %v499 = vsel %vm374, %v49, %v496
    %v500 = vsel %vm374, 0, %v498
    %v501 = vmul.f32 %v499, %v499
    %v502 = vmul.f32 %v501, -0.001358992
    %v503 = vadd.f32 %v502, 0.041655596
    %v504 = vmul.f32 %v501, %v503
    %v505 = vadd.f32 %v504, -0.4999988
    %v506 = vmul.f32 %v501, %v505
    %v507 = vadd.f32 1.0, %v506
    %v508 = vmul.f32 %v499, %v499
    %v509 = vmul.f32 %v508, -0.00019511016
    %v510 = vadd.f32 %v509, 0.008332121
    %v511 = vmul.f32 %v508, %v510
    %v512 = vadd.f32 %v511, -0.16666654
    %v513 = vmul.f32 %v508, %v512
    %v514 = vadd.f32 %v513, 1.0
    %v515 = vmul.f32 %v514, %v499
    %vm516 = vweird.f32 %v49
    %v517 = vadd.s32 %v500, 3
    %v518 = vand.u32 %v517, 3
    %vm519 = vcmp.lt.s32.totalorder %v518, 2
    %vm520 = vcmp.eq.s32.totalorder %v518, 0
    %v521 = vxor.u32 %v515, 2147483648
    %v522 = vsel %vm520, %v507, %v521
    %vm523 = vcmp.eq.s32.totalorder %v518, 2
    %v524 = vxor.u32 %v507, 2147483648
    %v525 = vsel %vm523, %v524, %v515
    %v526 = vsel %vm519, %v522, %v525
    %v527 = vsel %vm516, nan, %v526
    %v528 = vand.u32 2147483647, %v50
    %vm529 = vcmp.le.f32.partialorder %v528, 0.7853982
    %vm530 = vcmp.lt.s32.totalorder %v50, 0
    %v531 = vand.u32 %v50, 2139095040
    %v532 = vshrl.u32 %v531, 23
    %v533 = vsub.s32 %v532, 127
    %v534 = vand.u32 2147483647, %v50
    %v535 = vand.u32 %v534, 8388607
    %v536 = vor.u32 %v535, 8388608
    %v537 = vsub.s32 0, %v536
    %v538 = vadd.s32 %v533, 1
    %vm539 = vcmp.gt.s32.totalorder %v538, 0
    %v540 = vsel %vm539, %v538, 0
    %v541 = vshrl.u32 %v540, 5
    %v542 = vand.u32 %v540, 31
    %v543 = vsub.s32 32, %v542
    %v544 = vshrl.u32 683565275, %v543
    %v545 = vshll.u32 683565275, %v542
    %v546 = vshrl.u32 2475754826, %v543
    %v547 = vor.u32 %v545, %v546
    %v548 = vshll.u32 2475754826, %v542
    %v549 = vshrl.u32 2131351028, %v543
    %v550 = vor.u32 %v548, %v549
    %v551 = vshll.u32 2131351028, %v542
    %v552 = vshrl.u32 2102212464, %v543
    %v553 = vor.u32 %v551, %v552
    %v554 = vshll.u32 2102212464, %v542
    %v555 = vshrl.u32 920167782, %v543
    %v556 = vor.u32 %v554, %v555
    %v557 = vshll.u32 920167782, %v542
    %v558 = vshrl.u32 1326507024, %v543
    %v559 = vor.u32 %v557, %v558
    %vm560 = vcmp.lt.s32.totalorder %v541, 1
    %vm561 = vcmp.lt.s32.totalorder %v541, 2
    %vm562 = vcmp.lt.s32.totalorder %v541, 3
    %vm563 = vcmp.lt.s32.totalorder %v541, 4
    %v564 = vsel %vm560, %v544, %v547
    %v565 = vsel %vm563, %v553, 2102212464
    %v566 = vsel %vm562, %v550, %v565
    %v567 = vsel %vm561, %v564, %v566
    %v568 = vsel %vm560, %v547, %v550
    %v569 = vsel %vm563, %v556, 920167782
    %v570 = vsel %vm562, %v553, %v569
    %v571 = vsel %vm561, %v568, %v570
    %v572 = vsel %vm560, %v550, %v553
    %v573 = vsel %vm563, %v559, 1326507024
    %v574 = vsel %vm562, %v556, %v573
    %v575 = vsel %vm561, %v572, %v574
    %v576 = vshll.u32 %v536, 8
    %v577 = vand.u32 %v576, 65535
    %v578 = vshrl.u32 %v576, 16
    %v579 = vand.u32 %v575, 65535
    %v580 = vshrl.u32 %v575, 16
    %v581 = vmul.u32 %v577, %v579
    %v582 = vmul.u32 %v577, %v580
    %v583 = vmul.u32 %v578, %v579
    %v584 = vmul.u32 %v578, %v580
    %v585 = vshll.u32 %v582, 16
    %v586 = vshrl.u32 %v582, 16
    %v587 = vshll.u32 %v583, 16
    %v588 = vshrl.u32 %v583, 16
    %vm589 = vc.u32 %v581, %v585
    %v590 = vsel %vm589, 1, 0
    %v591 = vadd.s32 %v581, %v585
    %v592 = vadd.s32 %v584, %v590
    %vm593 = vc.u32 %v591, %v587
    %v594 = vsel %vm593, 1, 0
    %v595 = vadd.s32 %v591, %v587
    %v596 = vadd.s32 %v592, %v594
    %v597 = vadd.s32 %v596, %v586
    %v598 = vadd.s32 %v597, %v588
    %v599 = vand.u32 %v576, 65535
    %v600 = vshrl.u32 %v576, 16
    %v601 = vand.u32 %v571, 65535
    %v602 = vshrl.u32 %v571, 16
    %v603 = vmul.u32 %v599, %v601
    %v604 = vmul.u32 %v599, %v602
    %v605 = vmul.u32 %v600, %v601
    %v606 = vmul.u32 %v600, %v602
    %v607 = vshll.u32 %v604, 16
    %v608 = vshrl.u32 %v604, 16
    %v609 = vshll.u32 %v605, 16
    %v610 = vshrl.u32 %v605, 16
    %vm611 = vc.u32 %v603, %v607
    %v612 = vsel %vm611, 1, 0
    %v613 = vadd.s32 %v603, %v607
    %v614 = vadd.s32 %v606, %v612
    %vm615 = vc.u32 %v613, %v609
    %v616 = vsel %vm615, 1, 0
    %v617 = vadd.s32 %v613, %v609
    %v618 = vadd.s32 %v614, %v616
    %v619 = vadd.s32 %v618, %v608
    %v620 = vadd.s32 %v619, %v610
    %v621 = vmul.u32 %v576, %v567
    %v622 = vadd.s32 %v598, %v617
    %vm623 = vc.u32 %v598, %v617
    %v624 = vadd.s32 %v620, 1
    %v625 = vsel %vm623, %v624, %v620
    %v626 = vadd.s32 %v621, %v625
    %v627 = vadd.s32 %v626, 536870912
    %v628 = vshrl.u32 %v627, 30
    %v629 = vshll.u32 %v628, 30
    %v630 = vsub.s32 %v626, %v629
    %vm631 = vcmp.lt.s32.totalorder %v630, 0
    %v632 = vsub.s32 0, %v630
    %v633 = vsel %vm631, %v632, %v630
    %v634 = vclz %v633
    %v635 = vsub.s32 %v634, 2
    %vm636 = vcmp.gt.s32.totalorder 0, %v635
    %v637 = vsel %vm636, 0, %v635
    %v638 = vsub.s32 32, %v637
    %v639 = vshll.u32 %v630, %v637
    %v640 = vshrl.u32 %v622, %v638
    %v641 = vor.u32 %v639, %v640
    %v642 = vsub.s32 4294967266, %v637
    %v643 = vadd.s32 %v642, 127
    %v644 = vshll.u32 %v643, 23
    %v645 = vor.u32 4788187, %v644
    %v646 = vand.u32 2147483647, %v645
    %v648 = vcvt.s32.f32 %v641
    %v649 = vmul.f32 %v648, %v646
    %v650 = vxor.u32 %v649, 2147483648
    %v651 = vsel %vm530, %v650, %v649
    %v652 = vsub.s32 4, %v628
    %v653 = vsel %vm530, %v652, %v628
    %v654 = vsel %vm529, %v50, %v651
    %v655 = vsel %vm529, 0, %v653
    %v656 = vmul.f32 %v654, %v654
    %v657 = vmul.f32 %v656, -0.001358992
    %v658 = vadd.f32 %v657, 0.041655596
    %v659 = vmul.f32 %v656, %v658
    %v660 = vadd.f32 %v659, -0.4999988
    %v661 = vmul.f32 %v656, %v660
    %v662 = vadd.f32 1.0, %v661
    %v663 = vmul.f32 %v654, %v654
    %v664 = vmul.f32 %v663, -0.00019511016
    %v665 = vadd.f32 %v664, 0.008332121
    %v666 = vmul.f32 %v663, %v665
    %v667 = vadd.f32 %v666, -0.16666654
    %v668 = vmul.f32 %v663, %v667
    %v669 = vadd.f32 %v668, 1.0
    %v670 = vmul.f32 %v669, %v654
    %vm671 = vweird.f32 %v50
    %v672 = vadd.s32 %v655, 3
    %v673 = vand.u32 %v672, 3
    %vm674 = vcmp.lt.s32.totalorder %v673, 2
    %vm675 = vcmp.eq.s32.totalorder %v673, 0
    %v676 = vxor.u32 %v670, 2147483648
    %v677 = vsel %vm675, %v662, %v676
    %vm678 = vcmp.eq.s32.totalorder %v673, 2
    %v679 = vxor.u32 %v662, 2147483648
    %v680 = vsel %vm678, %v679, %v670
    %v681 = vsel %vm674, %v677, %v680
    %v682 = vsel %vm671, nan, %v681
    %v683 = vand.u32 2147483647, %v51
    %vm684 = vcmp.le.f32.partialorder %v683, 0.7853982
    %vm685 = vcmp.lt.s32.totalorder %v51, 0
    %v686 = vand.u32 %v51, 2139095040
    %v687 = vshrl.u32 %v686, 23
    %v688 = vsub.s32 %v687, 127
    %v689 = vand.u32 2147483647, %v51
    %v690 = vand.u32 %v689, 8388607
    %v691 = vor.u32 %v690, 8388608
    %v692 = vsub.s32 0, %v691
    %v693 = vadd.s32 %v688, 1
    %vm694 = vcmp.gt.s32.totalorder %v693, 0
    %v695 = vsel %vm694, %v693, 0
    %v696 = vshrl.u32 %v695, 5
    %v697 = vand.u32 %v695, 31
    %v698 = vsub.s32 32, %v697
    %v699 = vshrl.u32 683565275, %v698
    %v700 = vshll.u32 683565275, %v697
    %v701 = vshrl.u32 2475754826, %v698
    %v702 = vor.u32 %v700, %v701
    %v703 = vshll.u32 2475754826, %v697
    %v704 = vshrl.u32 2131351028, %v698
    %v705 = vor.u32 %v703, %v704
    %v706 = vshll.u32 2131351028, %v697
    %v707 = vshrl.u32 2102212464, %v698
    %v708 = vor.u32 %v706, %v707
    %v709 = vshll.u32 2102212464, %v697
    %v710 = vshrl.u32 920167782, %v698
    %v711 = vor.u32 %v709, %v710
    %v712 = vshll.u32 920167782, %v697
    %v713 = vshrl.u32 1326507024, %v698
    %v714 = vor.u32 %v712, %v713
    %vm715 = vcmp.lt.s32.totalorder %v696, 1
    %vm716 = vcmp.lt.s32.totalorder %v696, 2
    %vm717 = vcmp.lt.s32.totalorder %v696, 3
    %vm718 = vcmp.lt.s32.totalorder %v696, 4
    %v719 = vsel %vm715, %v699, %v702
    %v720 = vsel %vm718, %v708, 2102212464
    %v721 = vsel %vm717, %v705, %v720
    %v722 = vsel %vm716, %v719, %v721
    %v723 = vsel %vm715, %v702, %v705
    %v724 = vsel %vm718, %v711, 920167782
    %v725 = vsel %vm717, %v708, %v724
    %v726 = vsel %vm716, %v723, %v725
    %v727 = vsel %vm715, %v705, %v708
    %v728 = vsel %vm718, %v714, 1326507024
    %v729 = vsel %vm717, %v711, %v728
    %v730 = vsel %vm716, %v727, %v729
    %v731 = vshll.u32 %v691, 8
    %v732 = vand.u32 %v731, 65535
    %v733 = vshrl.u32 %v731, 16
    %v734 = vand.u32 %v730, 65535
    %v735 = vshrl.u32 %v730, 16
    %v736 = vmul.u32 %v732, %v734
    %v737 = vmul.u32 %v732, %v735
    %v738 = vmul.u32 %v733, %v734
    %v739 = vmul.u32 %v733, %v735
    %v740 = vshll.u32 %v737, 16
    %v741 = vshrl.u32 %v737, 16
    %v742 = vshll.u32 %v738, 16
    %v743 = vshrl.u32 %v738, 16
    %vm744 = vc.u32 %v736, %v740
    %v745 = vsel %vm744, 1, 0
    %v746 = vadd.s32 %v736, %v740
    %v747 = vadd.s32 %v739, %v745
    %vm748 = vc.u32 %v746, %v742
    %v749 = vsel %vm748, 1, 0
    %v750 = vadd.s32 %v746, %v742
    %v751 = vadd.s32 %v747, %v749
    %v752 = vadd.s32 %v751, %v741
    %v753 = vadd.s32 %v752, %v743
    %v754 = vand.u32 %v731, 65535
    %v755 = vshrl.u32 %v731, 16
    %v756 = vand.u32 %v726, 65535
    %v757 = vshrl.u32 %v726, 16
    %v758 = vmul.u32 %v754, %v756
    %v759 = vmul.u32 %v754, %v757
    %v760 = vmul.u32 %v755, %v756
    %v761 = vmul.u32 %v755, %v757
    %v762 = vshll.u32 %v759, 16
    %v763 = vshrl.u32 %v759, 16
    %v764 = vshll.u32 %v760, 16
    %v765 = vshrl.u32 %v760, 16
    %vm766 = vc.u32 %v758, %v762
    %v767 = vsel %vm766, 1, 0
    %v768 = vadd.s32 %v758, %v762
    %v769 = vadd.s32 %v761, %v767
    %vm770 = vc.u32 %v768, %v764
    %v771 = vsel %vm770, 1, 0
    %v772 = vadd.s32 %v768, %v764
    %v773 = vadd.s32 %v769, %v771
    %v774 = vadd.s32 %v773, %v763
    %v775 = vadd.s32 %v774, %v765
    %v776 = vmul.u32 %v731, %v722
    %v777 = vadd.s32 %v753, %v772
    %vm778 = vc.u32 %v753, %v772
    %v779 = vadd.s32 %v775, 1
    %v780 = vsel %vm778, %v779, %v775
    %v781 = vadd.s32 %v776, %v780
    %v782 = vadd.s32 %v781, 536870912
    %v783 = vshrl.u32 %v782, 30
    %v784 = vshll.u32 %v783, 30
    %v785 = vsub.s32 %v781, %v784
    %vm786 = vcmp.lt.s32.totalorder %v785, 0
    %v787 = vsub.s32 0, %v785
    %v788 = vsel %vm786, %v787, %v785
    %v789 = vclz %v788
    %v790 = vsub.s32 %v789, 2
    %vm791 = vcmp.gt.s32.totalorder 0, %v790
    %v792 = vsel %vm791, 0, %v790
    %v793 = vsub.s32 32, %v792
    %v794 = vshll.u32 %v785, %v792
    %v795 = vshrl.u32 %v777, %v793
    %v796 = vor.u32 %v794, %v795
    %v797 = vsub.s32 4294967266, %v792
    %v798 = vadd.s32 %v797, 127
    %v799 = vshll.u32 %v798, 23
    %v800 = vor.u32 4788187, %v799
    %v801 = vand.u32 2147483647, %v800
    %v803 = vcvt.s32.f32 %v796
    %v804 = vmul.f32 %v803, %v801
    %v805 = vxor.u32 %v804, 2147483648
    %v806 = vsel %vm685, %v805, %v804
    %v807 = vsub.s32 4, %v783
    %v808 = vsel %vm685, %v807, %v783
    %v809 = vsel %vm684, %v51, %v806
    %v810 = vsel %vm684, 0, %v808
    %v811 = vmul.f32 %v809, %v809
    %v812 = vmul.f32 %v811, -0.001358992
    %v813 = vadd.f32 %v812, 0.041655596
    %v814 = vmul.f32 %v811, %v813
    %v815 = vadd.f32 %v814, -0.4999988
    %v816 = vmul.f32 %v811, %v815
    %v817 = vadd.f32 1.0, %v816
    %v818 = vmul.f32 %v809, %v809
    %v819 = vmul.f32 %v818, -0.00019511016
    %v820 = vadd.f32 %v819, 0.008332121
    %v821 = vmul.f32 %v818, %v820
    %v822 = vadd.f32 %v821, -0.16666654
    %v823 = vmul.f32 %v818, %v822
    %v824 = vadd.f32 %v823, 1.0
    %v825 = vmul.f32 %v824, %v809
    %vm826 = vweird.f32 %v51
    %v827 = vadd.s32 %v810, 3
    %v828 = vand.u32 %v827, 3
    %vm829 = vcmp.lt.s32.totalorder %v828, 2
    %vm830 = vcmp.eq.s32.totalorder %v828, 0
    %v831 = vxor.u32 %v825, 2147483648
    %v832 = vsel %vm830, %v817, %v831
    %vm833 = vcmp.eq.s32.totalorder %v828, 2
    %v834 = vxor.u32 %v817, 2147483648
    %v835 = vsel %vm833, %v834, %v825
    %v836 = vsel %vm829, %v832, %v835
    %v837 = vsel %vm826, nan, %v836
    %v838 = vand.u32 2147483647, %v52
    %vm839 = vcmp.le.f32.partialorder %v838, 0.7853982
    %vm840 = vcmp.lt.s32.totalorder %v52, 0
    %v841 = vand.u32 %v52, 2139095040
    %v842 = vshrl.u32 %v841, 23
    %v843 = vsub.s32 %v842, 127
    %v844 = vand.u32 2147483647, %v52
    %v845 = vand.u32 %v844, 8388607
    %v846 = vor.u32 %v845, 8388608
    %v847 = vsub.s32 0, %v846
    %v848 = vadd.s32 %v843, 1
    %vm849 = vcmp.gt.s32.totalorder %v848, 0
    %v850 = vsel %vm849, %v848, 0
    %v851 = vshrl.u32 %v850, 5
    %v852 = vand.u32 %v850, 31
    %v853 = vsub.s32 32, %v852
    %v854 = vshrl.u32 683565275, %v853
    %v855 = vshll.u32 683565275, %v852
    %v856 = vshrl.u32 2475754826, %v853
    %v857 = vor.u32 %v855, %v856
    %v858 = vshll.u32 2475754826, %v852
    %v859 = vshrl.u32 2131351028, %v853
    %v860 = vor.u32 %v858, %v859
    %v861 = vshll.u32 2131351028, %v852
    %v862 = vshrl.u32 2102212464, %v853
    %v863 = vor.u32 %v861, %v862
    %v864 = vshll.u32 2102212464, %v852
    %v865 = vshrl.u32 920167782, %v853
    %v866 = vor.u32 %v864, %v865
    %v867 = vshll.u32 920167782, %v852
    %v868 = vshrl.u32 1326507024, %v853
    %v869 = vor.u32 %v867, %v868
    %vm870 = vcmp.lt.s32.totalorder %v851, 1
    %vm871 = vcmp.lt.s32.totalorder %v851, 2
    %vm872 = vcmp.lt.s32.totalorder %v851, 3
    %vm873 = vcmp.lt.s32.totalorder %v851, 4
    %v874 = vsel %vm870, %v854, %v857
    %v875 = vsel %vm873, %v863, 2102212464
    %v876 = vsel %vm872, %v860, %v875
    %v877 = vsel %vm871, %v874, %v876
    %v878 = vsel %vm870, %v857, %v860
    %v879 = vsel %vm873, %v866, 920167782
    %v880 = vsel %vm872, %v863, %v879
    %v881 = vsel %vm871, %v878, %v880
    %v882 = vsel %vm870, %v860, %v863
    %v883 = vsel %vm873, %v869, 1326507024
    %v884 = vsel %vm872, %v866, %v883
    %v885 = vsel %vm871, %v882, %v884
    %v886 = vshll.u32 %v846, 8
    %v887 = vand.u32 %v886, 65535
    %v888 = vshrl.u32 %v886, 16
    %v889 = vand.u32 %v885, 65535
    %v890 = vshrl.u32 %v885, 16
    %v891 = vmul.u32 %v887, %v889
    %v892 = vmul.u32 %v887, %v890
    %v893 = vmul.u32 %v888, %v889
    %v894 = vmul.u32 %v888, %v890
    %v895 = vshll.u32 %v892, 16
    %v896 = vshrl.u32 %v892, 16
    %v897 = vshll.u32 %v893, 16
    %v898 = vshrl.u32 %v893, 16
    %vm899 = vc.u32 %v891, %v895
    %v900 = vsel %vm899, 1, 0
    %v901 = vadd.s32 %v891, %v895
    %v902 = vadd.s32 %v894, %v900
    %vm903 = vc.u32 %v901, %v897
    %v904 = vsel %vm903, 1, 0
    %v905 = vadd.s32 %v901, %v897
    %v906 = vadd.s32 %v902, %v904
    %v907 = vadd.s32 %v906, %v896
    %v908 = vadd.s32 %v907, %v898
    %v909 = vand.u32 %v886, 65535
    %v910 = vshrl.u32 %v886, 16
    %v911 = vand.u32 %v881, 65535
    %v912 = vshrl.u32 %v881, 16
    %v913 = vmul.u32 %v909, %v911
    %v914 = vmul.u32 %v909, %v912
    %v915 = vmul.u32 %v910, %v911
    %v916 = vmul.u32 %v910, %v912
    %v917 = vshll.u32 %v914, 16
    %v918 = vshrl.u32 %v914, 16
    %v919 = vshll.u32 %v915, 16
    %v920 = vshrl.u32 %v915, 16
    %vm921 = vc.u32 %v913, %v917
    %v922 = vsel %vm921, 1, 0
    %v923 = vadd.s32 %v913, %v917
    %v924 = vadd.s32 %v916, %v922
    %vm925 = vc.u32 %v923, %v919
    %v926 = vsel %vm925, 1, 0
    %v927 = vadd.s32 %v923, %v919
    %v928 = vadd.s32 %v924, %v926
    %v929 = vadd.s32 %v928, %v918
    %v930 = vadd.s32 %v929, %v920
    %v931 = vmul.u32 %v886, %v877
    %v932 = vadd.s32 %v908, %v927
    %vm933 = vc.u32 %v908, %v927
    %v934 = vadd.s32 %v930, 1
    %v935 = vsel %vm933, %v934, %v930
    %v936 = vadd.s32 %v931, %v935
    %v937 = vadd.s32 %v936, 536870912
    %v938 = vshrl.u32 %v937, 30
    %v939 = vshll.u32 %v938, 30
    %v940 = vsub.s32 %v936, %v939
    %vm941 = vcmp.lt.s32.totalorder %v940, 0
    %v942 = vsub.s32 0, %v940
    %v943 = vsel %vm941, %v942, %v940
    %v944 = vclz %v943
    %v945 = vsub.s32 %v944, 2
    %vm946 = vcmp.gt.s32.totalorder 0, %v945
    %v947 = vsel %vm946, 0, %v945
    %v948 = vsub.s32 32, %v947
    %v949 = vshll.u32 %v940, %v947
    %v950 = vshrl.u32 %v932, %v948
    %v951 = vor.u32 %v949, %v950
    %v952 = vsub.s32 4294967266, %v947
    %v953 = vadd.s32 %v952, 127
    %v954 = vshll.u32 %v953, 23
    %v955 = vor.u32 4788187, %v954
    %v956 = vand.u32 2147483647, %v955
    %v958 = vcvt.s32.f32 %v951
    %v959 = vmul.f32 %v958, %v956
    %v960 = vxor.u32 %v959, 2147483648
    %v961 = vsel %vm840, %v960, %v959
    %v962 = vsub.s32 4, %v938
    %v963 = vsel %vm840, %v962, %v938
    %v964 = vsel %vm839, %v52, %v961
    %v965 = vsel %vm839, 0, %v963
    %v966 = vmul.f32 %v964, %v964
    %v967 = vmul.f32 %v966, -0.001358992
    %v968 = vadd.f32 %v967, 0.041655596
    %v969 = vmul.f32 %v966, %v968
    %v970 = vadd.f32 %v969, -0.4999988
    %v971 = vmul.f32 %v966, %v970
    %v972 = vadd.f32 1.0, %v971
    %v973 = vmul.f32 %v964, %v964
    %v974 = vmul.f32 %v973, -0.00019511016
    %v975 = vadd.f32 %v974, 0.008332121
    %v976 = vmul.f32 %v973, %v975
    %v977 = vadd.f32 %v976, -0.16666654
    %v978 = vmul.f32 %v973, %v977
    %v979 = vadd.f32 %v978, 1.0
    %v980 = vmul.f32 %v979, %v964
    %vm981 = vweird.f32 %v52
    %v982 = vadd.s32 %v965, 3
    %v983 = vand.u32 %v982, 3
    %vm984 = vcmp.lt.s32.totalorder %v983, 2
    %vm985 = vcmp.eq.s32.totalorder %v983, 0
    %v986 = vxor.u32 %v980, 2147483648
    %v987 = vsel %vm985, %v972, %v986
    %vm988 = vcmp.eq.s32.totalorder %v983, 2
    %v989 = vxor.u32 %v972, 2147483648
    %v990 = vsel %vm988, %v989, %v980
    %v991 = vsel %vm984, %v987, %v990
    %v992 = vsel %vm981, nan, %v991
    %v993 = vand.u32 2147483647, %v53
    %vm994 = vcmp.le.f32.partialorder %v993, 0.7853982
    %vm995 = vcmp.lt.s32.totalorder %v53, 0
    %v996 = vand.u32 %v53, 2139095040
    %v997 = vshrl.u32 %v996, 23
    %v998 = vsub.s32 %v997, 127
    %v999 = vand.u32 2147483647, %v53
    %v1000 = vand.u32 %v999, 8388607
    %v1001 = vor.u32 %v1000, 8388608
    %v1002 = vsub.s32 0, %v1001
    %v1003 = vadd.s32 %v998, 1
    %vm1004 = vcmp.gt.s32.totalorder %v1003, 0
    %v1005 = vsel %vm1004, %v1003, 0
    %v1006 = vshrl.u32 %v1005, 5
    %v1007 = vand.u32 %v1005, 31
    %v1008 = vsub.s32 32, %v1007
    %v1009 = vshrl.u32 683565275, %v1008
    %v1010 = vshll.u32 683565275, %v1007
    %v1011 = vshrl.u32 2475754826, %v1008
    %v1012 = vor.u32 %v1010, %v1011
    %v1013 = vshll.u32 2475754826, %v1007
    %v1014 = vshrl.u32 2131351028, %v1008
    %v1015 = vor.u32 %v1013, %v1014
    %v1016 = vshll.u32 2131351028, %v1007
    %v1017 = vshrl.u32 2102212464, %v1008
    %v1018 = vor.u32 %v1016, %v1017
    %v1019 = vshll.u32 2102212464, %v1007
    %v1020 = vshrl.u32 920167782, %v1008
    %v1021 = vor.u32 %v1019, %v1020
    %v1022 = vshll.u32 920167782, %v1007
    %v1023 = vshrl.u32 1326507024, %v1008
    %v1024 = vor.u32 %v1022, %v1023
    %vm1025 = vcmp.lt.s32.totalorder %v1006, 1
    %vm1026 = vcmp.lt.s32.totalorder %v1006, 2
    %vm1027 = vcmp.lt.s32.totalorder %v1006, 3
    %vm1028 = vcmp.lt.s32.totalorder %v1006, 4
    %v1029 = vsel %vm1025, %v1009, %v1012
    %v1030 = vsel %vm1028, %v1018, 2102212464
    %v1031 = vsel %vm1027, %v1015, %v1030
    %v1032 = vsel %vm1026, %v1029, %v1031
    %v1033 = vsel %vm1025, %v1012, %v1015
    %v1034 = vsel %vm1028, %v1021, 920167782
    %v1035 = vsel %vm1027, %v1018, %v1034
    %v1036 = vsel %vm1026, %v1033, %v1035
    %v1037 = vsel %vm1025, %v1015, %v1018
    %v1038 = vsel %vm1028, %v1024, 1326507024
    %v1039 = vsel %vm1027, %v1021, %v1038
    %v1040 = vsel %vm1026, %v1037, %v1039
    %v1041 = vshll.u32 %v1001, 8
    %v1042 = vand.u32 %v1041, 65535
    %v1043 = vshrl.u32 %v1041, 16
    %v1044 = vand.u32 %v1040, 65535
    %v1045 = vshrl.u32 %v1040, 16
    %v1046 = vmul.u32 %v1042, %v1044
    %v1047 = vmul.u32 %v1042, %v1045
    %v1048 = vmul.u32 %v1043, %v1044
    %v1049 = vmul.u32 %v1043, %v1045
    %v1050 = vshll.u32 %v1047, 16
    %v1051 = vshrl.u32 %v1047, 16
    %v1052 = vshll.u32 %v1048, 16
    %v1053 = vshrl.u32 %v1048, 16
    %vm1054 = vc.u32 %v1046, %v1050
    %v1055 = vsel %vm1054, 1, 0
    %v1056 = vadd.s32 %v1046, %v1050
    %v1057 = vadd.s32 %v1049, %v1055
    %vm1058 = vc.u32 %v1056, %v1052
    %v1059 = vsel %vm1058, 1, 0
    %v1060 = vadd.s32 %v1056, %v1052
    %v1061 = vadd.s32 %v1057, %v1059
    %v1062 = vadd.s32 %v1061, %v1051
    %v1063 = vadd.s32 %v1062, %v1053
    %v1064 = vand.u32 %v1041, 65535
    %v1065 = vshrl.u32 %v1041, 16
    %v1066 = vand.u32 %v1036, 65535
    %v1067 = vshrl.u32 %v1036, 16
    %v1068 = vmul.u32 %v1064, %v1066
    %v1069 = vmul.u32 %v1064, %v1067
    %v1070 = vmul.u32 %v1065, %v1066
    %v1071 = vmul.u32 %v1065, %v1067
    %v1072 = vshll.u32 %v1069, 16
    %v1073 = vshrl.u32 %v1069, 16
    %v1074 = vshll.u32 %v1070, 16
    %v1075 = vshrl.u32 %v1070, 16
    %vm1076 = vc.u32 %v1068, %v1072
    %v1077 = vsel %vm1076, 1, 0
    %v1078 = vadd.s32 %v1068, %v1072
    %v1079 = vadd.s32 %v1071, %v1077
    %vm1080 = vc.u32 %v1078, %v1074
    %v1081 = vsel %vm1080, 1, 0
    %v1082 = vadd.s32 %v1078, %v1074
    %v1083 = vadd.s32 %v1079, %v1081
    %v1084 = vadd.s32 %v1083, %v1073
    %v1085 = vadd.s32 %v1084, %v1075
    %v1086 = vmul.u32 %v1041, %v1032
    %v1087 = vadd.s32 %v1063, %v1082
    %vm1088 = vc.u32 %v1063, %v1082
    %v1089 = vadd.s32 %v1085, 1
    %v1090 = vsel %vm1088, %v1089, %v1085
    %v1091 = vadd.s32 %v1086, %v1090
    %v1092 = vadd.s32 %v1091, 536870912
    %v1093 = vshrl.u32 %v1092, 30
    %v1094 = vshll.u32 %v1093, 30
    %v1095 = vsub.s32 %v1091, %v1094
    %vm1096 = vcmp.lt.s32.totalorder %v1095, 0
    %v1097 = vsub.s32 0, %v1095
    %v1098 = vsel %vm1096, %v1097, %v1095
    %v1099 = vclz %v1098
    %v1100 = vsub.s32 %v1099, 2
    %vm1101 = vcmp.gt.s32.totalorder 0, %v1100
    %v1102 = vsel %vm1101, 0, %v1100
    %v1103 = vsub.s32 32, %v1102
    %v1104 = vshll.u32 %v1095, %v1102
    %v1105 = vshrl.u32 %v1087, %v1103
    %v1106 = vor.u32 %v1104, %v1105
    %v1107 = vsub.s32 4294967266, %v1102
    %v1108 = vadd.s32 %v1107, 127
    %v1109 = vshll.u32 %v1108, 23
    %v1110 = vor.u32 4788187, %v1109
    %v1111 = vand.u32 2147483647, %v1110
    %v1113 = vcvt.s32.f32 %v1106
    %v1114 = vmul.f32 %v1113, %v1111
    %v1115 = vxor.u32 %v1114, 2147483648
    %v1116 = vsel %vm995, %v1115, %v1114
    %v1117 = vsub.s32 4, %v1093
    %v1118 = vsel %vm995, %v1117, %v1093
    %v1119 = vsel %vm994, %v53, %v1116
    %v1120 = vsel %vm994, 0, %v1118
    %v1121 = vmul.f32 %v1119, %v1119
    %v1122 = vmul.f32 %v1121, -0.001358992
    %v1123 = vadd.f32 %v1122, 0.041655596
    %v1124 = vmul.f32 %v1121, %v1123
    %v1125 = vadd.f32 %v1124, -0.4999988
    %v1126 = vmul.f32 %v1121, %v1125
    %v1127 = vadd.f32 1.0, %v1126
    %v1128 = vmul.f32 %v1119, %v1119
    %v1129 = vmul.f32 %v1128, -0.00019511016
    %v1130 = vadd.f32 %v1129, 0.008332121
    %v1131 = vmul.f32 %v1128, %v1130
    %v1132 = vadd.f32 %v1131, -0.16666654
    %v1133 = vmul.f32 %v1128, %v1132
    %v1134 = vadd.f32 %v1133, 1.0
    %v1135 = vmul.f32 %v1134, %v1119
    %vm1136 = vweird.f32 %v53
    %v1137 = vadd.s32 %v1120, 3
    %v1138 = vand.u32 %v1137, 3
    %vm1139 = vcmp.lt.s32.totalorder %v1138, 2
    %vm1140 = vcmp.eq.s32.totalorder %v1138, 0
    %v1141 = vxor.u32 %v1135, 2147483648
    %v1142 = vsel %vm1140, %v1127, %v1141
    %vm1143 = vcmp.eq.s32.totalorder %v1138, 2
    %v1144 = vxor.u32 %v1127, 2147483648
    %v1145 = vsel %vm1143, %v1144, %v1135
    %v1146 = vsel %vm1139, %v1142, %v1145
    %v1147 = vsel %vm1136, nan, %v1146
    %v1148 = vand.u32 2147483647, %v54
    %vm1149 = vcmp.le.f32.partialorder %v1148, 0.7853982
    %vm1150 = vcmp.lt.s32.totalorder %v54, 0
    %v1151 = vand.u32 %v54, 2139095040
    %v1152 = vshrl.u32 %v1151, 23
    %v1153 = vsub.s32 %v1152, 127
    %v1154 = vand.u32 2147483647, %v54
    %v1155 = vand.u32 %v1154, 8388607
    %v1156 = vor.u32 %v1155, 8388608
    %v1157 = vsub.s32 0, %v1156
    %v1158 = vadd.s32 %v1153, 1
    %vm1159 = vcmp.gt.s32.totalorder %v1158, 0
    %v1160 = vsel %vm1159, %v1158, 0
    %v1161 = vshrl.u32 %v1160, 5
    %v1162 = vand.u32 %v1160, 31
    %v1163 = vsub.s32 32, %v1162
    %v1164 = vshrl.u32 683565275, %v1163
    %v1165 = vshll.u32 683565275, %v1162
    %v1166 = vshrl.u32 2475754826, %v1163
    %v1167 = vor.u32 %v1165, %v1166
    %v1168 = vshll.u32 2475754826, %v1162
    %v1169 = vshrl.u32 2131351028, %v1163
    %v1170 = vor.u32 %v1168, %v1169
    %v1171 = vshll.u32 2131351028, %v1162
    %v1172 = vshrl.u32 2102212464, %v1163
    %v1173 = vor.u32 %v1171, %v1172
    %v1174 = vshll.u32 2102212464, %v1162
    %v1175 = vshrl.u32 920167782, %v1163
    %v1176 = vor.u32 %v1174, %v1175
    %v1177 = vshll.u32 920167782, %v1162
    %v1178 = vshrl.u32 1326507024, %v1163
    %v1179 = vor.u32 %v1177, %v1178
    %vm1180 = vcmp.lt.s32.totalorder %v1161, 1
    %vm1181 = vcmp.lt.s32.totalorder %v1161, 2
    %vm1182 = vcmp.lt.s32.totalorder %v1161, 3
    %vm1183 = vcmp.lt.s32.totalorder %v1161, 4
    %v1184 = vsel %vm1180, %v1164, %v1167
    %v1185 = vsel %vm1183, %v1173, 2102212464
    %v1186 = vsel %vm1182, %v1170, %v1185
    %v1187 = vsel %vm1181, %v1184, %v1186
    %v1188 = vsel %vm1180, %v1167, %v1170
    %v1189 = vsel %vm1183, %v1176, 920167782
    %v1190 = vsel %vm1182, %v1173, %v1189
    %v1191 = vsel %vm1181, %v1188, %v1190
    %v1192 = vsel %vm1180, %v1170, %v1173
    %v1193 = vsel %vm1183, %v1179, 1326507024
    %v1194 = vsel %vm1182, %v1176, %v1193
    %v1195 = vsel %vm1181, %v1192, %v1194
    %v1196 = vshll.u32 %v1156, 8
    %v1197 = vand.u32 %v1196, 65535
    %v1198 = vshrl.u32 %v1196, 16
    %v1199 = vand.u32 %v1195, 65535
    %v1200 = vshrl.u32 %v1195, 16
    %v1201 = vmul.u32 %v1197, %v1199
    %v1202 = vmul.u32 %v1197, %v1200
    %v1203 = vmul.u32 %v1198, %v1199
    %v1204 = vmul.u32 %v1198, %v1200
    %v1205 = vshll.u32 %v1202, 16
    %v1206 = vshrl.u32 %v1202, 16
    %v1207 = vshll.u32 %v1203, 16
    %v1208 = vshrl.u32 %v1203, 16
    %vm1209 = vc.u32 %v1201, %v1205
    %v1210 = vsel %vm1209, 1, 0
    %v1211 = vadd.s32 %v1201, %v1205
    %v1212 = vadd.s32 %v1204, %v1210
    %vm1213 = vc.u32 %v1211, %v1207
    %v1214 = vsel %vm1213, 1, 0
    %v1215 = vadd.s32 %v1211, %v1207
    %v1216 = vadd.s32 %v1212, %v1214
    %v1217 = vadd.s32 %v1216, %v1206
    %v1218 = vadd.s32 %v1217, %v1208
    %v1219 = vand.u32 %v1196, 65535
    %v1220 = vshrl.u32 %v1196, 16
    %v1221 = vand.u32 %v1191, 65535
    %v1222 = vshrl.u32 %v1191, 16
    %v1223 = vmul.u32 %v1219, %v1221
    %v1224 = vmul.u32 %v1219, %v1222
    %v1225 = vmul.u32 %v1220, %v1221
    %v1226 = vmul.u32 %v1220, %v1222
    %v1227 = vshll.u32 %v1224, 16
    %v1228 = vshrl.u32 %v1224, 16
    %v1229 = vshll.u32 %v1225, 16
    %v1230 = vshrl.u32 %v1225, 16
    %vm1231 = vc.u32 %v1223, %v1227
    %v1232 = vsel %vm1231, 1, 0
    %v1233 = vadd.s32 %v1223, %v1227
    %v1234 = vadd.s32 %v1226, %v1232
    %vm1235 = vc.u32 %v1233, %v1229
    %v1236 = vsel %vm1235, 1, 0
    %v1237 = vadd.s32 %v1233, %v1229
    %v1238 = vadd.s32 %v1234, %v1236
    %v1239 = vadd.s32 %v1238, %v1228
    %v1240 = vadd.s32 %v1239, %v1230
    %v1241 = vmul.u32 %v1196, %v1187
    %v1242 = vadd.s32 %v1218, %v1237
    %vm1243 = vc.u32 %v1218, %v1237
    %v1244 = vadd.s32 %v1240, 1
    %v1245 = vsel %vm1243, %v1244, %v1240
    %v1246 = vadd.s32 %v1241, %v1245
    %v1247 = vadd.s32 %v1246, 536870912
    %v1248 = vshrl.u32 %v1247, 30
    %v1249 = vshll.u32 %v1248, 30
    %v1250 = vsub.s32 %v1246, %v1249
    %vm1251 = vcmp.lt.s32.totalorder %v1250, 0
    %v1252 = vsub.s32 0, %v1250
    %v1253 = vsel %vm1251, %v1252, %v1250
    %v1254 = vclz %v1253
    %v1255 = vsub.s32 %v1254, 2
    %vm1256 = vcmp.gt.s32.totalorder 0, %v1255
    %v1257 = vsel %vm1256, 0, %v1255
    %v1258 = vsub.s32 32, %v1257
    %v1259 = vshll.u32 %v1250, %v1257
    %v1260 = vshrl.u32 %v1242, %v1258
    %v1261 = vor.u32 %v1259, %v1260
    %v1262 = vsub.s32 4294967266, %v1257
    %v1263 = vadd.s32 %v1262, 127
    %v1264 = vshll.u32 %v1263, 23
    %v1265 = vor.u32 4788187, %v1264
    %v1266 = vand.u32 2147483647, %v1265
    %v1268 = vcvt.s32.f32 %v1261
    %v1269 = vmul.f32 %v1268, %v1266
    %v1270 = vxor.u32 %v1269, 2147483648
    %v1271 = vsel %vm1150, %v1270, %v1269
    %v1272 = vsub.s32 4, %v1248
    %v1273 = vsel %vm1150, %v1272, %v1248
    %v1274 = vsel %vm1149, %v54, %v1271
    %v1275 = vsel %vm1149, 0, %v1273
    %v1276 = vmul.f32 %v1274, %v1274
    %v1277 = vmul.f32 %v1276, -0.001358992
    %v1278 = vadd.f32 %v1277, 0.041655596
    %v1279 = vmul.f32 %v1276, %v1278
    %v1280 = vadd.f32 %v1279, -0.4999988
    %v1281 = vmul.f32 %v1276, %v1280
    %v1282 = vadd.f32 1.0, %v1281
    %v1283 = vmul.f32 %v1274, %v1274
    %v1284 = vmul.f32 %v1283, -0.00019511016
    %v1285 = vadd.f32 %v1284, 0.008332121
    %v1286 = vmul.f32 %v1283, %v1285
    %v1287 = vadd.f32 %v1286, -0.16666654
    %v1288 = vmul.f32 %v1283, %v1287
    %v1289 = vadd.f32 %v1288, 1.0
    %v1290 = vmul.f32 %v1289, %v1274
    %vm1291 = vweird.f32 %v54
    %v1292 = vadd.s32 %v1275, 3
    %v1293 = vand.u32 %v1292, 3
    %vm1294 = vcmp.lt.s32.totalorder %v1293, 2
    %vm1295 = vcmp.eq.s32.totalorder %v1293, 0
    %v1296 = vxor.u32 %v1290, 2147483648
    %v1297 = vsel %vm1295, %v1282, %v1296
    %vm1298 = vcmp.eq.s32.totalorder %v1293, 2
    %v1299 = vxor.u32 %v1282, 2147483648
    %v1300 = vsel %vm1298, %v1299, %v1290
    %v1301 = vsel %vm1294, %v1297, %v1300
    %v1302 = vsel %vm1291, nan, %v1301
    %v1303 = vand.u32 2147483647, %v55
    %vm1304 = vcmp.le.f32.partialorder %v1303, 0.7853982
    %vm1305 = vcmp.lt.s32.totalorder %v55, 0
    %v1306 = vand.u32 %v55, 2139095040
    %v1307 = vshrl.u32 %v1306, 23
    %v1308 = vsub.s32 %v1307, 127
    %v1309 = vand.u32 2147483647, %v55
    %v1310 = vand.u32 %v1309, 8388607
    %v1311 = vor.u32 %v1310, 8388608
    %v1312 = vsub.s32 0, %v1311
    %v1313 = vadd.s32 %v1308, 1
    %vm1314 = vcmp.gt.s32.totalorder %v1313, 0
    %v1315 = vsel %vm1314, %v1313, 0
    %v1316 = vshrl.u32 %v1315, 5
    %v1317 = vand.u32 %v1315, 31
    %v1318 = vsub.s32 32, %v1317
    %v1319 = vshrl.u32 683565275, %v1318
    %v1320 = vshll.u32 683565275, %v1317
    %v1321 = vshrl.u32 2475754826, %v1318
    %v1322 = vor.u32 %v1320, %v1321
    %v1323 = vshll.u32 2475754826, %v1317
    %v1324 = vshrl.u32 2131351028, %v1318
    %v1325 = vor.u32 %v1323, %v1324
    %v1326 = vshll.u32 2131351028, %v1317
    %v1327 = vshrl.u32 2102212464, %v1318
    %v1328 = vor.u32 %v1326, %v1327
    %v1329 = vshll.u32 2102212464, %v1317
    %v1330 = vshrl.u32 920167782, %v1318
    %v1331 = vor.u32 %v1329, %v1330
    %v1332 = vshll.u32 920167782, %v1317
    %v1333 = vshrl.u32 1326507024, %v1318
    %v1334 = vor.u32 %v1332, %v1333
    %vm1335 = vcmp.lt.s32.totalorder %v1316, 1
    %vm1336 = vcmp.lt.s32.totalorder %v1316, 2
    %vm1337 = vcmp.lt.s32.totalorder %v1316, 3
    %vm1338 = vcmp.lt.s32.totalorder %v1316, 4
    %v1339 = vsel %vm1335, %v1319, %v1322
    %v1340 = vsel %vm1338, %v1328, 2102212464
    %v1341 = vsel %vm1337, %v1325, %v1340
    %v1342 = vsel %vm1336, %v1339, %v1341
    %v1343 = vsel %vm1335, %v1322, %v1325
    %v1344 = vsel %vm1338, %v1331, 920167782
    %v1345 = vsel %vm1337, %v1328, %v1344
    %v1346 = vsel %vm1336, %v1343, %v1345
    %v1347 = vsel %vm1335, %v1325, %v1328
    %v1348 = vsel %vm1338, %v1334, 1326507024
    %v1349 = vsel %vm1337, %v1331, %v1348
    %v1350 = vsel %vm1336, %v1347, %v1349
    %v1351 = vshll.u32 %v1311, 8
    %v1352 = vand.u32 %v1351, 65535
    %v1353 = vshrl.u32 %v1351, 16
    %v1354 = vand.u32 %v1350, 65535
    %v1355 = vshrl.u32 %v1350, 16
    %v1356 = vmul.u32 %v1352, %v1354
    %v1357 = vmul.u32 %v1352, %v1355
    %v1358 = vmul.u32 %v1353, %v1354
    %v1359 = vmul.u32 %v1353, %v1355
    %v1360 = vshll.u32 %v1357, 16
    %v1361 = vshrl.u32 %v1357, 16
    %v1362 = vshll.u32 %v1358, 16
    %v1363 = vshrl.u32 %v1358, 16
    %vm1364 = vc.u32 %v1356, %v1360
    %v1365 = vsel %vm1364, 1, 0
    %v1366 = vadd.s32 %v1356, %v1360
    %v1367 = vadd.s32 %v1359, %v1365
    %vm1368 = vc.u32 %v1366, %v1362
    %v1369 = vsel %vm1368, 1, 0
    %v1370 = vadd.s32 %v1366, %v1362
    %v1371 = vadd.s32 %v1367, %v1369
    %v1372 = vadd.s32 %v1371, %v1361
    %v1373 = vadd.s32 %v1372, %v1363
    %v1374 = vand.u32 %v1351, 65535
    %v1375 = vshrl.u32 %v1351, 16
    %v1376 = vand.u32 %v1346, 65535
    %v1377 = vshrl.u32 %v1346, 16
    %v1378 = vmul.u32 %v1374, %v1376
    %v1379 = vmul.u32 %v1374, %v1377
    %v1380 = vmul.u32 %v1375, %v1376
    %v1381 = vmul.u32 %v1375, %v1377
    %v1382 = vshll.u32 %v1379, 16
    %v1383 = vshrl.u32 %v1379, 16
    %v1384 = vshll.u32 %v1380, 16
    %v1385 = vshrl.u32 %v1380, 16
    %vm1386 = vc.u32 %v1378, %v1382
    %v1387 = vsel %vm1386, 1, 0
    %v1388 = vadd.s32 %v1378, %v1382
    %v1389 = vadd.s32 %v1381, %v1387
    %vm1390 = vc.u32 %v1388, %v1384
    %v1391 = vsel %vm1390, 1, 0
    %v1392 = vadd.s32 %v1388, %v1384
    %v1393 = vadd.s32 %v1389, %v1391
    %v1394 = vadd.s32 %v1393, %v1383
    %v1395 = vadd.s32 %v1394, %v1385
    %v1396 = vmul.u32 %v1351, %v1342
    %v1397 = vadd.s32 %v1373, %v1392
    %vm1398 = vc.u32 %v1373, %v1392
    %v1399 = vadd.s32 %v1395, 1
    %v1400 = vsel %vm1398, %v1399, %v1395
    %v1401 = vadd.s32 %v1396, %v1400
    %v1402 = vadd.s32 %v1401, 536870912
    %v1403 = vshrl.u32 %v1402, 30
    %v1404 = vshll.u32 %v1403, 30
    %v1405 = vsub.s32 %v1401, %v1404
    %vm1406 = vcmp.lt.s32.totalorder %v1405, 0
    %v1407 = vsub.s32 0, %v1405
    %v1408 = vsel %vm1406, %v1407, %v1405
    %v1409 = vclz %v1408
    %v1410 = vsub.s32 %v1409, 2
    %vm1411 = vcmp.gt.s32.totalorder 0, %v1410
    %v1412 = vsel %vm1411, 0, %v1410
    %v1413 = vsub.s32 32, %v1412
    %v1414 = vshll.u32 %v1405, %v1412
    %v1415 = vshrl.u32 %v1397, %v1413
    %v1416 = vor.u32 %v1414, %v1415
    %v1417 = vsub.s32 4294967266, %v1412
    %v1418 = vadd.s32 %v1417, 127
    %v1419 = vshll.u32 %v1418, 23
    %v1420 = vor.u32 4788187, %v1419
    %v1421 = vand.u32 2147483647, %v1420
    %v1423 = vcvt.s32.f32 %v1416
    %v1424 = vmul.f32 %v1423, %v1421
    %v1425 = vxor.u32 %v1424, 2147483648
    %v1426 = vsel %vm1305, %v1425, %v1424
    %v1427 = vsub.s32 4, %v1403
    %v1428 = vsel %vm1305, %v1427, %v1403
    %v1429 = vsel %vm1304, %v55, %v1426
    %v1430 = vsel %vm1304, 0, %v1428
    %v1431 = vmul.f32 %v1429, %v1429
    %v1432 = vmul.f32 %v1431, -0.001358992
    %v1433 = vadd.f32 %v1432, 0.041655596
    %v1434 = vmul.f32 %v1431, %v1433
    %v1435 = vadd.f32 %v1434, -0.4999988
    %v1436 = vmul.f32 %v1431, %v1435
    %v1437 = vadd.f32 1.0, %v1436
    %v1438 = vmul.f32 %v1429, %v1429
    %v1439 = vmul.f32 %v1438, -0.00019511016
    %v1440 = vadd.f32 %v1439, 0.008332121
    %v1441 = vmul.f32 %v1438, %v1440
    %v1442 = vadd.f32 %v1441, -0.16666654
    %v1443 = vmul.f32 %v1438, %v1442
    %v1444 = vadd.f32 %v1443, 1.0
    %v1445 = vmul.f32 %v1444, %v1429
    %vm1446 = vweird.f32 %v55
    %v1447 = vadd.s32 %v1430, 3
    %v1448 = vand.u32 %v1447, 3
    %vm1449 = vcmp.lt.s32.totalorder %v1448, 2
    %vm1450 = vcmp.eq.s32.totalorder %v1448, 0
    %v1451 = vxor.u32 %v1445, 2147483648
    %v1452 = vsel %vm1450, %v1437, %v1451
    %vm1453 = vcmp.eq.s32.totalorder %v1448, 2
    %v1454 = vxor.u32 %v1437, 2147483648
    %v1455 = vsel %vm1453, %v1454, %v1445
    %v1456 = vsel %vm1449, %v1452, %v1455
    %v1457 = vsel %vm1446, nan, %v1456
    %v1458 = vand.u32 2147483647, %v56
    %vm1459 = vcmp.le.f32.partialorder %v1458, 0.7853982
    %vm1460 = vcmp.lt.s32.totalorder %v56, 0
    %v1461 = vand.u32 %v56, 2139095040
    %v1462 = vshrl.u32 %v1461, 23
    %v1463 = vsub.s32 %v1462, 127
    %v1464 = vand.u32 2147483647, %v56
    %v1465 = vand.u32 %v1464, 8388607
    %v1466 = vor.u32 %v1465, 8388608
    %v1467 = vsub.s32 0, %v1466
    %v1468 = vadd.s32 %v1463, 1
    %vm1469 = vcmp.gt.s32.totalorder %v1468, 0
    %v1470 = vsel %vm1469, %v1468, 0
    %v1471 = vshrl.u32 %v1470, 5
    %v1472 = vand.u32 %v1470, 31
    %v1473 = vsub.s32 32, %v1472
    %v1474 = vshrl.u32 683565275, %v1473
    %v1475 = vshll.u32 683565275, %v1472
    %v1476 = vshrl.u32 2475754826, %v1473
    %v1477 = vor.u32 %v1475, %v1476
    %v1478 = vshll.u32 2475754826, %v1472
    %v1479 = vshrl.u32 2131351028, %v1473
    %v1480 = vor.u32 %v1478, %v1479
    %v1481 = vshll.u32 2131351028, %v1472
    %v1482 = vshrl.u32 2102212464, %v1473
    %v1483 = vor.u32 %v1481, %v1482
    %v1484 = vshll.u32 2102212464, %v1472
    %v1485 = vshrl.u32 920167782, %v1473
    %v1486 = vor.u32 %v1484, %v1485
    %v1487 = vshll.u32 920167782, %v1472
    %v1488 = vshrl.u32 1326507024, %v1473
    %v1489 = vor.u32 %v1487, %v1488
    %vm1490 = vcmp.lt.s32.totalorder %v1471, 1
    %vm1491 = vcmp.lt.s32.totalorder %v1471, 2
    %vm1492 = vcmp.lt.s32.totalorder %v1471, 3
    %vm1493 = vcmp.lt.s32.totalorder %v1471, 4
    %v1494 = vsel %vm1490, %v1474, %v1477
    %v1495 = vsel %vm1493, %v1483, 2102212464
    %v1496 = vsel %vm1492, %v1480, %v1495
    %v1497 = vsel %vm1491, %v1494, %v1496
    %v1498 = vsel %vm1490, %v1477, %v1480
    %v1499 = vsel %vm1493, %v1486, 920167782
    %v1500 = vsel %vm1492, %v1483, %v1499
    %v1501 = vsel %vm1491, %v1498, %v1500
    %v1502 = vsel %vm1490, %v1480, %v1483
    %v1503 = vsel %vm1493, %v1489, 1326507024
    %v1504 = vsel %vm1492, %v1486, %v1503
    %v1505 = vsel %vm1491, %v1502, %v1504
    %v1506 = vshll.u32 %v1466, 8
    %v1507 = vand.u32 %v1506, 65535
    %v1508 = vshrl.u32 %v1506, 16
    %v1509 = vand.u32 %v1505, 65535
    %v1510 = vshrl.u32 %v1505, 16
    %v1511 = vmul.u32 %v1507, %v1509
    %v1512 = vmul.u32 %v1507, %v1510
    %v1513 = vmul.u32 %v1508, %v1509
    %v1514 = vmul.u32 %v1508, %v1510
    %v1515 = vshll.u32 %v1512, 16
    %v1516 = vshrl.u32 %v1512, 16
    %v1517 = vshll.u32 %v1513, 16
    %v1518 = vshrl.u32 %v1513, 16
    %vm1519 = vc.u32 %v1511, %v1515
    %v1520 = vsel %vm1519, 1, 0
    %v1521 = vadd.s32 %v1511, %v1515
    %v1522 = vadd.s32 %v1514, %v1520
    %vm1523 = vc.u32 %v1521, %v1517
    %v1524 = vsel %vm1523, 1, 0
    %v1525 = vadd.s32 %v1521, %v1517
    %v1526 = vadd.s32 %v1522, %v1524
    %v1527 = vadd.s32 %v1526, %v1516
    %v1528 = vadd.s32 %v1527, %v1518
    %v1529 = vand.u32 %v1506, 65535
    %v1530 = vshrl.u32 %v1506, 16
    %v1531 = vand.u32 %v1501, 65535
    %v1532 = vshrl.u32 %v1501, 16
    %v1533 = vmul.u32 %v1529, %v1531
    %v1534 = vmul.u32 %v1529, %v1532
    %v1535 = vmul.u32 %v1530, %v1531
    %v1536 = vmul.u32 %v1530, %v1532
    %v1537 = vshll.u32 %v1534, 16
    %v1538 = vshrl.u32 %v1534, 16
    %v1539 = vshll.u32 %v1535, 16
    %v1540 = vshrl.u32 %v1535, 16
    %vm1541 = vc.u32 %v1533, %v1537
    %v1542 = vsel %vm1541, 1, 0
    %v1543 = vadd.s32 %v1533, %v1537
    %v1544 = vadd.s32 %v1536, %v1542
    %vm1545 = vc.u32 %v1543, %v1539
    %v1546 = vsel %vm1545, 1, 0
    %v1547 = vadd.s32 %v1543, %v1539
    %v1548 = vadd.s32 %v1544, %v1546
    %v1549 = vadd.s32 %v1548, %v1538
    %v1550 = vadd.s32 %v1549, %v1540
    %v1551 = vmul.u32 %v1506, %v1497
    %v1552 = vadd.s32 %v1528, %v1547
    %vm1553 = vc.u32 %v1528, %v1547
    %v1554 = vadd.s32 %v1550, 1
    %v1555 = vsel %vm1553, %v1554, %v1550
    %v1556 = vadd.s32 %v1551, %v1555
    %v1557 = vadd.s32 %v1556, 536870912
    %v1558 = vshrl.u32 %v1557, 30
    %v1559 = vshll.u32 %v1558, 30
    %v1560 = vsub.s32 %v1556, %v1559
    %vm1561 = vcmp.lt.s32.totalorder %v1560, 0
    %v1562 = vsub.s32 0, %v1560
    %v1563 = vsel %vm1561, %v1562, %v1560
    %v1564 = vclz %v1563
    %v1565 = vsub.s32 %v1564, 2
    %vm1566 = vcmp.gt.s32.totalorder 0, %v1565
    %v1567 = vsel %vm1566, 0, %v1565
    %v1568 = vsub.s32 32, %v1567
    %v1569 = vshll.u32 %v1560, %v1567
    %v1570 = vshrl.u32 %v1552, %v1568
    %v1571 = vor.u32 %v1569, %v1570
    %v1572 = vsub.s32 4294967266, %v1567
    %v1573 = vadd.s32 %v1572, 127
    %v1574 = vshll.u32 %v1573, 23
    %v1575 = vor.u32 4788187, %v1574
    %v1576 = vand.u32 2147483647, %v1575
    %v1578 = vcvt.s32.f32 %v1571
    %v1579 = vmul.f32 %v1578, %v1576
    %v1580 = vxor.u32 %v1579, 2147483648
    %v1581 = vsel %vm1460, %v1580, %v1579
    %v1582 = vsub.s32 4, %v1558
    %v1583 = vsel %vm1460, %v1582, %v1558
    %v1584 = vsel %vm1459, %v56, %v1581
    %v1585 = vsel %vm1459, 0, %v1583
    %v1586 = vmul.f32 %v1584, %v1584
    %v1587 = vmul.f32 %v1586, -0.001358992
    %v1588 = vadd.f32 %v1587, 0.041655596
    %v1589 = vmul.f32 %v1586, %v1588
    %v1590 = vadd.f32 %v1589, -0.4999988
    %v1591 = vmul.f32 %v1586, %v1590
    %v1592 = vadd.f32 1.0, %v1591
    %v1593 = vmul.f32 %v1584, %v1584
    %v1594 = vmul.f32 %v1593, -0.00019511016
    %v1595 = vadd.f32 %v1594, 0.008332121
    %v1596 = vmul.f32 %v1593, %v1595
    %v1597 = vadd.f32 %v1596, -0.16666654
    %v1598 = vmul.f32 %v1593, %v1597
    %v1599 = vadd.f32 %v1598, 1.0
    %v1600 = vmul.f32 %v1599, %v1584
    %vm1601 = vweird.f32 %v56
    %v1602 = vadd.s32 %v1585, 3
    %v1603 = vand.u32 %v1602, 3
    %vm1604 = vcmp.lt.s32.totalorder %v1603, 2
    %vm1605 = vcmp.eq.s32.totalorder %v1603, 0
    %v1606 = vxor.u32 %v1600, 2147483648
    %v1607 = vsel %vm1605, %v1592, %v1606
    %vm1608 = vcmp.eq.s32.totalorder %v1603, 2
    %v1609 = vxor.u32 %v1592, 2147483648
    %v1610 = vsel %vm1608, %v1609, %v1600
    %v1611 = vsel %vm1604, %v1607, %v1610
    %v1612 = vsel %vm1601, nan, %v1611
    %v1613 = vand.u32 2147483647, %v57
    %vm1614 = vcmp.le.f32.partialorder %v1613, 0.7853982
    %vm1615 = vcmp.lt.s32.totalorder %v57, 0
    %v1616 = vand.u32 %v57, 2139095040
    %v1617 = vshrl.u32 %v1616, 23
    %v1618 = vsub.s32 %v1617, 127
    %v1619 = vand.u32 2147483647, %v57
    %v1620 = vand.u32 %v1619, 8388607
    %v1621 = vor.u32 %v1620, 8388608
    %v1622 = vsub.s32 0, %v1621
    %v1623 = vadd.s32 %v1618, 1
    %vm1624 = vcmp.gt.s32.totalorder %v1623, 0
    %v1625 = vsel %vm1624, %v1623, 0
    %v1626 = vshrl.u32 %v1625, 5
    %v1627 = vand.u32 %v1625, 31
    %v1628 = vsub.s32 32, %v1627
    %v1629 = vshrl.u32 683565275, %v1628
    %v1630 = vshll.u32 683565275, %v1627
    %v1631 = vshrl.u32 2475754826, %v1628
    %v1632 = vor.u32 %v1630, %v1631
    %v1633 = vshll.u32 2475754826, %v1627
    %v1634 = vshrl.u32 2131351028, %v1628
    %v1635 = vor.u32 %v1633, %v1634
    %v1636 = vshll.u32 2131351028, %v1627
    %v1637 = vshrl.u32 2102212464, %v1628
    %v1638 = vor.u32 %v1636, %v1637
    %v1639 = vshll.u32 2102212464, %v1627
    %v1640 = vshrl.u32 920167782, %v1628
    %v1641 = vor.u32 %v1639, %v1640
    %v1642 = vshll.u32 920167782, %v1627
    %v1643 = vshrl.u32 1326507024, %v1628
    %v1644 = vor.u32 %v1642, %v1643
    %vm1645 = vcmp.lt.s32.totalorder %v1626, 1
    %vm1646 = vcmp.lt.s32.totalorder %v1626, 2
    %vm1647 = vcmp.lt.s32.totalorder %v1626, 3
    %vm1648 = vcmp.lt.s32.totalorder %v1626, 4
    %v1649 = vsel %vm1645, %v1629, %v1632
    %v1650 = vsel %vm1648, %v1638, 2102212464
    %v1651 = vsel %vm1647, %v1635, %v1650
    %v1652 = vsel %vm1646, %v1649, %v1651
    %v1653 = vsel %vm1645, %v1632, %v1635
    %v1654 = vsel %vm1648, %v1641, 920167782
    %v1655 = vsel %vm1647, %v1638, %v1654
    %v1656 = vsel %vm1646, %v1653, %v1655
    %v1657 = vsel %vm1645, %v1635, %v1638
    %v1658 = vsel %vm1648, %v1644, 1326507024
    %v1659 = vsel %vm1647, %v1641, %v1658
    %v1660 = vsel %vm1646, %v1657, %v1659
    %v1661 = vshll.u32 %v1621, 8
    %v1662 = vand.u32 %v1661, 65535
    %v1663 = vshrl.u32 %v1661, 16
    %v1664 = vand.u32 %v1660, 65535
    %v1665 = vshrl.u32 %v1660, 16
    %v1666 = vmul.u32 %v1662, %v1664
    %v1667 = vmul.u32 %v1662, %v1665
    %v1668 = vmul.u32 %v1663, %v1664
    %v1669 = vmul.u32 %v1663, %v1665
    %v1670 = vshll.u32 %v1667, 16
    %v1671 = vshrl.u32 %v1667, 16
    %v1672 = vshll.u32 %v1668, 16
    %v1673 = vshrl.u32 %v1668, 16
    %vm1674 = vc.u32 %v1666, %v1670
    %v1675 = vsel %vm1674, 1, 0
    %v1676 = vadd.s32 %v1666, %v1670
    %v1677 = vadd.s32 %v1669, %v1675
    %vm1678 = vc.u32 %v1676, %v1672
    %v1679 = vsel %vm1678, 1, 0
    %v1680 = vadd.s32 %v1676, %v1672
    %v1681 = vadd.s32 %v1677, %v1679
    %v1682 = vadd.s32 %v1681, %v1671
    %v1683 = vadd.s32 %v1682, %v1673
    %v1684 = vand.u32 %v1661, 65535
    %v1685 = vshrl.u32 %v1661, 16
    %v1686 = vand.u32 %v1656, 65535
    %v1687 = vshrl.u32 %v1656, 16
    %v1688 = vmul.u32 %v1684, %v1686
    %v1689 = vmul.u32 %v1684, %v1687
    %v1690 = vmul.u32 %v1685, %v1686
    %v1691 = vmul.u32 %v1685, %v1687
    %v1692 = vshll.u32 %v1689, 16
    %v1693 = vshrl.u32 %v1689, 16
    %v1694 = vshll.u32 %v1690, 16
    %v1695 = vshrl.u32 %v1690, 16
    %vm1696 = vc.u32 %v1688, %v1692
    %v1697 = vsel %vm1696, 1, 0
    %v1698 = vadd.s32 %v1688, %v1692
    %v1699 = vadd.s32 %v1691, %v1697
    %vm1700 = vc.u32 %v1698, %v1694
    %v1701 = vsel %vm1700, 1, 0
    %v1702 = vadd.s32 %v1698, %v1694
    %v1703 = vadd.s32 %v1699, %v1701
    %v1704 = vadd.s32 %v1703, %v1693
    %v1705 = vadd.s32 %v1704, %v1695
    %v1706 = vmul.u32 %v1661, %v1652
    %v1707 = vadd.s32 %v1683, %v1702
    %vm1708 = vc.u32 %v1683, %v1702
    %v1709 = vadd.s32 %v1705, 1
    %v1710 = vsel %vm1708, %v1709, %v1705
    %v1711 = vadd.s32 %v1706, %v1710
    %v1712 = vadd.s32 %v1711, 536870912
    %v1713 = vshrl.u32 %v1712, 30
    %v1714 = vshll.u32 %v1713, 30
    %v1715 = vsub.s32 %v1711, %v1714
    %vm1716 = vcmp.lt.s32.totalorder %v1715, 0
    %v1717 = vsub.s32 0, %v1715
    %v1718 = vsel %vm1716, %v1717, %v1715
    %v1719 = vclz %v1718
    %v1720 = vsub.s32 %v1719, 2
    %vm1721 = vcmp.gt.s32.totalorder 0, %v1720
    %v1722 = vsel %vm1721, 0, %v1720
    %v1723 = vsub.s32 32, %v1722
    %v1724 = vshll.u32 %v1715, %v1722
    %v1725 = vshrl.u32 %v1707, %v1723
    %v1726 = vor.u32 %v1724, %v1725
    %v1727 = vsub.s32 4294967266, %v1722
    %v1728 = vadd.s32 %v1727, 127
    %v1729 = vshll.u32 %v1728, 23
    %v1730 = vor.u32 4788187, %v1729
    %v1731 = vand.u32 2147483647, %v1730
    %v1733 = vcvt.s32.f32 %v1726
    %v1734 = vmul.f32 %v1733, %v1731
    %v1735 = vxor.u32 %v1734, 2147483648
    %v1736 = vsel %vm1615, %v1735, %v1734
    %v1737 = vsub.s32 4, %v1713
    %v1738 = vsel %vm1615, %v1737, %v1713
    %v1739 = vsel %vm1614, %v57, %v1736
    %v1740 = vsel %vm1614, 0, %v1738
    %v1741 = vmul.f32 %v1739, %v1739
    %v1742 = vmul.f32 %v1741, -0.001358992
    %v1743 = vadd.f32 %v1742, 0.041655596
    %v1744 = vmul.f32 %v1741, %v1743
    %v1745 = vadd.f32 %v1744, -0.4999988
    %v1746 = vmul.f32 %v1741, %v1745
    %v1747 = vadd.f32 1.0, %v1746
    %v1748 = vmul.f32 %v1739, %v1739
    %v1749 = vmul.f32 %v1748, -0.00019511016
    %v1750 = vadd.f32 %v1749, 0.008332121
    %v1751 = vmul.f32 %v1748, %v1750
    %v1752 = vadd.f32 %v1751, -0.16666654
    %v1753 = vmul.f32 %v1748, %v1752
    %v1754 = vadd.f32 %v1753, 1.0
    %v1755 = vmul.f32 %v1754, %v1739
    %vm1756 = vweird.f32 %v57
    %v1757 = vadd.s32 %v1740, 3
    %v1758 = vand.u32 %v1757, 3
    %vm1759 = vcmp.lt.s32.totalorder %v1758, 2
    %vm1760 = vcmp.eq.s32.totalorder %v1758, 0
    %v1761 = vxor.u32 %v1755, 2147483648
    %v1762 = vsel %vm1760, %v1747, %v1761
    %vm1763 = vcmp.eq.s32.totalorder %v1758, 2
    %v1764 = vxor.u32 %v1747, 2147483648
    %v1765 = vsel %vm1763, %v1764, %v1755
    %v1766 = vsel %vm1759, %v1762, %v1765
    %v1767 = vsel %vm1756, nan, %v1766
    %v1768 = vand.u32 2147483647, %v58
    %vm1769 = vcmp.le.f32.partialorder %v1768, 0.7853982
    %vm1770 = vcmp.lt.s32.totalorder %v58, 0
    %v1771 = vand.u32 %v58, 2139095040
    %v1772 = vshrl.u32 %v1771, 23
    %v1773 = vsub.s32 %v1772, 127
    %v1774 = vand.u32 2147483647, %v58
    %v1775 = vand.u32 %v1774, 8388607
    %v1776 = vor.u32 %v1775, 8388608
    %v1777 = vsub.s32 0, %v1776
    %v1778 = vadd.s32 %v1773, 1
    %vm1779 = vcmp.gt.s32.totalorder %v1778, 0
    %v1780 = vsel %vm1779, %v1778, 0
    %v1781 = vshrl.u32 %v1780, 5
    %v1782 = vand.u32 %v1780, 31
    %v1783 = vsub.s32 32, %v1782
    %v1784 = vshrl.u32 683565275, %v1783
    %v1785 = vshll.u32 683565275, %v1782
    %v1786 = vshrl.u32 2475754826, %v1783
    %v1787 = vor.u32 %v1785, %v1786
    %v1788 = vshll.u32 2475754826, %v1782
    %v1789 = vshrl.u32 2131351028, %v1783
    %v1790 = vor.u32 %v1788, %v1789
    %v1791 = vshll.u32 2131351028, %v1782
    %v1792 = vshrl.u32 2102212464, %v1783
    %v1793 = vor.u32 %v1791, %v1792
    %v1794 = vshll.u32 2102212464, %v1782
    %v1795 = vshrl.u32 920167782, %v1783
    %v1796 = vor.u32 %v1794, %v1795
    %v1797 = vshll.u32 920167782, %v1782
    %v1798 = vshrl.u32 1326507024, %v1783
    %v1799 = vor.u32 %v1797, %v1798
    %vm1800 = vcmp.lt.s32.totalorder %v1781, 1
    %vm1801 = vcmp.lt.s32.totalorder %v1781, 2
    %vm1802 = vcmp.lt.s32.totalorder %v1781, 3
    %vm1803 = vcmp.lt.s32.totalorder %v1781, 4
    %v1804 = vsel %vm1800, %v1784, %v1787
    %v1805 = vsel %vm1803, %v1793, 2102212464
    %v1806 = vsel %vm1802, %v1790, %v1805
    %v1807 = vsel %vm1801, %v1804, %v1806
    %v1808 = vsel %vm1800, %v1787, %v1790
    %v1809 = vsel %vm1803, %v1796, 920167782
    %v1810 = vsel %vm1802, %v1793, %v1809
    %v1811 = vsel %vm1801, %v1808, %v1810
    %v1812 = vsel %vm1800, %v1790, %v1793
    %v1813 = vsel %vm1803, %v1799, 1326507024
    %v1814 = vsel %vm1802, %v1796, %v1813
    %v1815 = vsel %vm1801, %v1812, %v1814
    %v1816 = vshll.u32 %v1776, 8
    %v1817 = vand.u32 %v1816, 65535
    %v1818 = vshrl.u32 %v1816, 16
    %v1819 = vand.u32 %v1815, 65535
    %v1820 = vshrl.u32 %v1815, 16
    %v1821 = vmul.u32 %v1817, %v1819
    %v1822 = vmul.u32 %v1817, %v1820
    %v1823 = vmul.u32 %v1818, %v1819
    %v1824 = vmul.u32 %v1818, %v1820
    %v1825 = vshll.u32 %v1822, 16
    %v1826 = vshrl.u32 %v1822, 16
    %v1827 = vshll.u32 %v1823, 16
    %v1828 = vshrl.u32 %v1823, 16
    %vm1829 = vc.u32 %v1821, %v1825
    %v1830 = vsel %vm1829, 1, 0
    %v1831 = vadd.s32 %v1821, %v1825
    %v1832 = vadd.s32 %v1824, %v1830
    %vm1833 = vc.u32 %v1831, %v1827
    %v1834 = vsel %vm1833, 1, 0
    %v1835 = vadd.s32 %v1831, %v1827
    %v1836 = vadd.s32 %v1832, %v1834
    %v1837 = vadd.s32 %v1836, %v1826
    %v1838 = vadd.s32 %v1837, %v1828
    %v1839 = vand.u32 %v1816, 65535
    %v1840 = vshrl.u32 %v1816, 16
    %v1841 = vand.u32 %v1811, 65535
    %v1842 = vshrl.u32 %v1811, 16
    %v1843 = vmul.u32 %v1839, %v1841
    %v1844 = vmul.u32 %v1839, %v1842
    %v1845 = vmul.u32 %v1840, %v1841
    %v1846 = vmul.u32 %v1840, %v1842
    %v1847 = vshll.u32 %v1844, 16
    %v1848 = vshrl.u32 %v1844, 16
    %v1849 = vshll.u32 %v1845, 16
    %v1850 = vshrl.u32 %v1845, 16
    %vm1851 = vc.u32 %v1843, %v1847
    %v1852 = vsel %vm1851, 1, 0
    %v1853 = vadd.s32 %v1843, %v1847
    %v1854 = vadd.s32 %v1846, %v1852
    %vm1855 = vc.u32 %v1853, %v1849
    %v1856 = vsel %vm1855, 1, 0
    %v1857 = vadd.s32 %v1853, %v1849
    %v1858 = vadd.s32 %v1854, %v1856
    %v1859 = vadd.s32 %v1858, %v1848
    %v1860 = vadd.s32 %v1859, %v1850
    %v1861 = vmul.u32 %v1816, %v1807
    %v1862 = vadd.s32 %v1838, %v1857
    %vm1863 = vc.u32 %v1838, %v1857
    %v1864 = vadd.s32 %v1860, 1
    %v1865 = vsel %vm1863, %v1864, %v1860
    %v1866 = vadd.s32 %v1861, %v1865
    %v1867 = vadd.s32 %v1866, 536870912
    %v1868 = vshrl.u32 %v1867, 30
    %v1869 = vshll.u32 %v1868, 30
    %v1870 = vsub.s32 %v1866, %v1869
    %vm1871 = vcmp.lt.s32.totalorder %v1870, 0
    %v1872 = vsub.s32 0, %v1870
    %v1873 = vsel %vm1871, %v1872, %v1870
    %v1874 = vclz %v1873
    %v1875 = vsub.s32 %v1874, 2
    %vm1876 = vcmp.gt.s32.totalorder 0, %v1875
    %v1877 = vsel %vm1876, 0, %v1875
    %v1878 = vsub.s32 32, %v1877
    %v1879 = vshll.u32 %v1870, %v1877
    %v1880 = vshrl.u32 %v1862, %v1878
    %v1881 = vor.u32 %v1879, %v1880
    %v1882 = vsub.s32 4294967266, %v1877
    %v1883 = vadd.s32 %v1882, 127
    %v1884 = vshll.u32 %v1883, 23
    %v1885 = vor.u32 4788187, %v1884
    %v1886 = vand.u32 2147483647, %v1885
    %v1888 = vcvt.s32.f32 %v1881
    %v1889 = vmul.f32 %v1888, %v1886
    %v1890 = vxor.u32 %v1889, 2147483648
    %v1891 = vsel %vm1770, %v1890, %v1889
    %v1892 = vsub.s32 4, %v1868
    %v1893 = vsel %vm1770, %v1892, %v1868
    %v1894 = vsel %vm1769, %v58, %v1891
    %v1895 = vsel %vm1769, 0, %v1893
    %v1896 = vmul.f32 %v1894, %v1894
    %v1897 = vmul.f32 %v1896, -0.001358992
    %v1898 = vadd.f32 %v1897, 0.041655596
    %v1899 = vmul.f32 %v1896, %v1898
    %v1900 = vadd.f32 %v1899, -0.4999988
    %v1901 = vmul.f32 %v1896, %v1900
    %v1902 = vadd.f32 1.0, %v1901
    %v1903 = vmul.f32 %v1894, %v1894
    %v1904 = vmul.f32 %v1903, -0.00019511016
    %v1905 = vadd.f32 %v1904, 0.008332121
    %v1906 = vmul.f32 %v1903, %v1905
    %v1907 = vadd.f32 %v1906, -0.16666654
    %v1908 = vmul.f32 %v1903, %v1907
    %v1909 = vadd.f32 %v1908, 1.0
    %v1910 = vmul.f32 %v1909, %v1894
    %vm1911 = vweird.f32 %v58
    %v1912 = vadd.s32 %v1895, 3
    %v1913 = vand.u32 %v1912, 3
    %vm1914 = vcmp.lt.s32.totalorder %v1913, 2
    %vm1915 = vcmp.eq.s32.totalorder %v1913, 0
    %v1916 = vxor.u32 %v1910, 2147483648
    %v1917 = vsel %vm1915, %v1902, %v1916
    %vm1918 = vcmp.eq.s32.totalorder %v1913, 2
    %v1919 = vxor.u32 %v1902, 2147483648
    %v1920 = vsel %vm1918, %v1919, %v1910
    %v1921 = vsel %vm1914, %v1917, %v1920
    %v1922 = vsel %vm1911, nan, %v1921
    %v1923 = vand.u32 2147483647, %v59
    %vm1924 = vcmp.le.f32.partialorder %v1923, 0.7853982
    %vm1925 = vcmp.lt.s32.totalorder %v59, 0
    %v1926 = vand.u32 %v59, 2139095040
    %v1927 = vshrl.u32 %v1926, 23
    %v1928 = vsub.s32 %v1927, 127
    %v1929 = vand.u32 2147483647, %v59
    %v1930 = vand.u32 %v1929, 8388607
    %v1931 = vor.u32 %v1930, 8388608
    %v1932 = vsub.s32 0, %v1931
    %v1933 = vadd.s32 %v1928, 1
    %vm1934 = vcmp.gt.s32.totalorder %v1933, 0
    %v1935 = vsel %vm1934, %v1933, 0
    %v1936 = vshrl.u32 %v1935, 5
    %v1937 = vand.u32 %v1935, 31
    %v1938 = vsub.s32 32, %v1937
    %v1939 = vshrl.u32 683565275, %v1938
    %v1940 = vshll.u32 683565275, %v1937
    %v1941 = vshrl.u32 2475754826, %v1938
    %v1942 = vor.u32 %v1940, %v1941
    %v1943 = vshll.u32 2475754826, %v1937
    %v1944 = vshrl.u32 2131351028, %v1938
    %v1945 = vor.u32 %v1943, %v1944
    %v1946 = vshll.u32 2131351028, %v1937
    %v1947 = vshrl.u32 2102212464, %v1938
    %v1948 = vor.u32 %v1946, %v1947
    %v1949 = vshll.u32 2102212464, %v1937
    %v1950 = vshrl.u32 920167782, %v1938
    %v1951 = vor.u32 %v1949, %v1950
    %v1952 = vshll.u32 920167782, %v1937
    %v1953 = vshrl.u32 1326507024, %v1938
    %v1954 = vor.u32 %v1952, %v1953
    %vm1955 = vcmp.lt.s32.totalorder %v1936, 1
    %vm1956 = vcmp.lt.s32.totalorder %v1936, 2
    %vm1957 = vcmp.lt.s32.totalorder %v1936, 3
    %vm1958 = vcmp.lt.s32.totalorder %v1936, 4
    %v1959 = vsel %vm1955, %v1939, %v1942
    %v1960 = vsel %vm1958, %v1948, 2102212464
    %v1961 = vsel %vm1957, %v1945, %v1960
    %v1962 = vsel %vm1956, %v1959, %v1961
    %v1963 = vsel %vm1955, %v1942, %v1945
    %v1964 = vsel %vm1958, %v1951, 920167782
    %v1965 = vsel %vm1957, %v1948, %v1964
    %v1966 = vsel %vm1956, %v1963, %v1965
    %v1967 = vsel %vm1955, %v1945, %v1948
    %v1968 = vsel %vm1958, %v1954, 1326507024
    %v1969 = vsel %vm1957, %v1951, %v1968
    %v1970 = vsel %vm1956, %v1967, %v1969
    %v1971 = vshll.u32 %v1931, 8
    %v1972 = vand.u32 %v1971, 65535
    %v1973 = vshrl.u32 %v1971, 16
    %v1974 = vand.u32 %v1970, 65535
    %v1975 = vshrl.u32 %v1970, 16
    %v1976 = vmul.u32 %v1972, %v1974
    %v1977 = vmul.u32 %v1972, %v1975
    %v1978 = vmul.u32 %v1973, %v1974
    %v1979 = vmul.u32 %v1973, %v1975
    %v1980 = vshll.u32 %v1977, 16
    %v1981 = vshrl.u32 %v1977, 16
    %v1982 = vshll.u32 %v1978, 16
    %v1983 = vshrl.u32 %v1978, 16
    %vm1984 = vc.u32 %v1976, %v1980
    %v1985 = vsel %vm1984, 1, 0
    %v1986 = vadd.s32 %v1976, %v1980
    %v1987 = vadd.s32 %v1979, %v1985
    %vm1988 = vc.u32 %v1986, %v1982
    %v1989 = vsel %vm1988, 1, 0
    %v1990 = vadd.s32 %v1986, %v1982
    %v1991 = vadd.s32 %v1987, %v1989
    %v1992 = vadd.s32 %v1991, %v1981
    %v1993 = vadd.s32 %v1992, %v1983
    %v1994 = vand.u32 %v1971, 65535
    %v1995 = vshrl.u32 %v1971, 16
    %v1996 = vand.u32 %v1966, 65535
    %v1997 = vshrl.u32 %v1966, 16
    %v1998 = vmul.u32 %v1994, %v1996
    %v1999 = vmul.u32 %v1994, %v1997
    %v2000 = vmul.u32 %v1995, %v1996
    %v2001 = vmul.u32 %v1995, %v1997
    %v2002 = vshll.u32 %v1999, 16
    %v2003 = vshrl.u32 %v1999, 16
    %v2004 = vshll.u32 %v2000, 16
    %v2005 = vshrl.u32 %v2000, 16
    %vm2006 = vc.u32 %v1998, %v2002
    %v2007 = vsel %vm2006, 1, 0
    %v2008 = vadd.s32 %v1998, %v2002
    %v2009 = vadd.s32 %v2001, %v2007
    %vm2010 = vc.u32 %v2008, %v2004
    %v2011 = vsel %vm2010, 1, 0
    %v2012 = vadd.s32 %v2008, %v2004
    %v2013 = vadd.s32 %v2009, %v2011
    %v2014 = vadd.s32 %v2013, %v2003
    %v2015 = vadd.s32 %v2014, %v2005
    %v2016 = vmul.u32 %v1971, %v1962
    %v2017 = vadd.s32 %v1993, %v2012
    %vm2018 = vc.u32 %v1993, %v2012
    %v2019 = vadd.s32 %v2015, 1
    %v2020 = vsel %vm2018, %v2019, %v2015
    %v2021 = vadd.s32 %v2016, %v2020
    %v2022 = vadd.s32 %v2021, 536870912
    %v2023 = vshrl.u32 %v2022, 30
    %v2024 = vshll.u32 %v2023, 30
    %v2025 = vsub.s32 %v2021, %v2024
    %vm2026 = vcmp.lt.s32.totalorder %v2025, 0
    %v2027 = vsub.s32 0, %v2025
    %v2028 = vsel %vm2026, %v2027, %v2025
    %v2029 = vclz %v2028
    %v2030 = vsub.s32 %v2029, 2
    %vm2031 = vcmp.gt.s32.totalorder 0, %v2030
    %v2032 = vsel %vm2031, 0, %v2030
    %v2033 = vsub.s32 32, %v2032
    %v2034 = vshll.u32 %v2025, %v2032
    %v2035 = vshrl.u32 %v2017, %v2033
    %v2036 = vor.u32 %v2034, %v2035
    %v2037 = vsub.s32 4294967266, %v2032
    %v2038 = vadd.s32 %v2037, 127
    %v2039 = vshll.u32 %v2038, 23
    %v2040 = vor.u32 4788187, %v2039
    %v2041 = vand.u32 2147483647, %v2040
    %v2043 = vcvt.s32.f32 %v2036
    %v2044 = vmul.f32 %v2043, %v2041
    %v2045 = vxor.u32 %v2044, 2147483648
    %v2046 = vsel %vm1925, %v2045, %v2044
    %v2047 = vsub.s32 4, %v2023
    %v2048 = vsel %vm1925, %v2047, %v2023
    %v2049 = vsel %vm1924, %v59, %v2046
    %v2050 = vsel %vm1924, 0, %v2048
    %v2051 = vmul.f32 %v2049, %v2049
    %v2052 = vmul.f32 %v2051, -0.001358992
    %v2053 = vadd.f32 %v2052, 0.041655596
    %v2054 = vmul.f32 %v2051, %v2053
    %v2055 = vadd.f32 %v2054, -0.4999988
    %v2056 = vmul.f32 %v2051, %v2055
    %v2057 = vadd.f32 1.0, %v2056
    %v2058 = vmul.f32 %v2049, %v2049
    %v2059 = vmul.f32 %v2058, -0.00019511016
    %v2060 = vadd.f32 %v2059, 0.008332121
    %v2061 = vmul.f32 %v2058, %v2060
    %v2062 = vadd.f32 %v2061, -0.16666654
    %v2063 = vmul.f32 %v2058, %v2062
    %v2064 = vadd.f32 %v2063, 1.0
    %v2065 = vmul.f32 %v2064, %v2049
    %vm2066 = vweird.f32 %v59
    %v2067 = vadd.s32 %v2050, 3
    %v2068 = vand.u32 %v2067, 3
    %vm2069 = vcmp.lt.s32.totalorder %v2068, 2
    %vm2070 = vcmp.eq.s32.totalorder %v2068, 0
    %v2071 = vxor.u32 %v2065, 2147483648
    %v2072 = vsel %vm2070, %v2057, %v2071
    %vm2073 = vcmp.eq.s32.totalorder %v2068, 2
    %v2074 = vxor.u32 %v2057, 2147483648
    %v2075 = vsel %vm2073, %v2074, %v2065
    %v2076 = vsel %vm2069, %v2072, %v2075
    %v2077 = vsel %vm2066, nan, %v2076
    %v2078 = vand.u32 2147483647, %v60
    %vm2079 = vcmp.le.f32.partialorder %v2078, 0.7853982
    %vm2080 = vcmp.lt.s32.totalorder %v60, 0
    %v2081 = vand.u32 %v60, 2139095040
    %v2082 = vshrl.u32 %v2081, 23
    %v2083 = vsub.s32 %v2082, 127
    %v2084 = vand.u32 2147483647, %v60
    %v2085 = vand.u32 %v2084, 8388607
    %v2086 = vor.u32 %v2085, 8388608
    %v2087 = vsub.s32 0, %v2086
    %v2088 = vadd.s32 %v2083, 1
    %vm2089 = vcmp.gt.s32.totalorder %v2088, 0
    %v2090 = vsel %vm2089, %v2088, 0
    %v2091 = vshrl.u32 %v2090, 5
    %v2092 = vand.u32 %v2090, 31
    %v2093 = vsub.s32 32, %v2092
    %v2094 = vshrl.u32 683565275, %v2093
    %v2095 = vshll.u32 683565275, %v2092
    %v2096 = vshrl.u32 2475754826, %v2093
    %v2097 = vor.u32 %v2095, %v2096
    %v2098 = vshll.u32 2475754826, %v2092
    %v2099 = vshrl.u32 2131351028, %v2093
    %v2100 = vor.u32 %v2098, %v2099
    %v2101 = vshll.u32 2131351028, %v2092
    %v2102 = vshrl.u32 2102212464, %v2093
    %v2103 = vor.u32 %v2101, %v2102
    %v2104 = vshll.u32 2102212464, %v2092
    %v2105 = vshrl.u32 920167782, %v2093
    %v2106 = vor.u32 %v2104, %v2105
    %v2107 = vshll.u32 920167782, %v2092
    %v2108 = vshrl.u32 1326507024, %v2093
    %v2109 = vor.u32 %v2107, %v2108
    %vm2110 = vcmp.lt.s32.totalorder %v2091, 1
    %vm2111 = vcmp.lt.s32.totalorder %v2091, 2
    %vm2112 = vcmp.lt.s32.totalorder %v2091, 3
    %vm2113 = vcmp.lt.s32.totalorder %v2091, 4
    %v2114 = vsel %vm2110, %v2094, %v2097
    %v2115 = vsel %vm2113, %v2103, 2102212464
    %v2116 = vsel %vm2112, %v2100, %v2115
    %v2117 = vsel %vm2111, %v2114, %v2116
    %v2118 = vsel %vm2110, %v2097, %v2100
    %v2119 = vsel %vm2113, %v2106, 920167782
    %v2120 = vsel %vm2112, %v2103, %v2119
    %v2121 = vsel %vm2111, %v2118, %v2120
    %v2122 = vsel %vm2110, %v2100, %v2103
    %v2123 = vsel %vm2113, %v2109, 1326507024
    %v2124 = vsel %vm2112, %v2106, %v2123
    %v2125 = vsel %vm2111, %v2122, %v2124
    %v2126 = vshll.u32 %v2086, 8
    %v2127 = vand.u32 %v2126, 65535
    %v2128 = vshrl.u32 %v2126, 16
    %v2129 = vand.u32 %v2125, 65535
    %v2130 = vshrl.u32 %v2125, 16
    %v2131 = vmul.u32 %v2127, %v2129
    %v2132 = vmul.u32 %v2127, %v2130
    %v2133 = vmul.u32 %v2128, %v2129
    %v2134 = vmul.u32 %v2128, %v2130
    %v2135 = vshll.u32 %v2132, 16
    %v2136 = vshrl.u32 %v2132, 16
    %v2137 = vshll.u32 %v2133, 16
    %v2138 = vshrl.u32 %v2133, 16
    %vm2139 = vc.u32 %v2131, %v2135
    %v2140 = vsel %vm2139, 1, 0
    %v2141 = vadd.s32 %v2131, %v2135
    %v2142 = vadd.s32 %v2134, %v2140
    %vm2143 = vc.u32 %v2141, %v2137
    %v2144 = vsel %vm2143, 1, 0
    %v2145 = vadd.s32 %v2141, %v2137
    %v2146 = vadd.s32 %v2142, %v2144
    %v2147 = vadd.s32 %v2146, %v2136
    %v2148 = vadd.s32 %v2147, %v2138
    %v2149 = vand.u32 %v2126, 65535
    %v2150 = vshrl.u32 %v2126, 16
    %v2151 = vand.u32 %v2121, 65535
    %v2152 = vshrl.u32 %v2121, 16
    %v2153 = vmul.u32 %v2149, %v2151
    %v2154 = vmul.u32 %v2149, %v2152
    %v2155 = vmul.u32 %v2150, %v2151
    %v2156 = vmul.u32 %v2150, %v2152
    %v2157 = vshll.u32 %v2154, 16
    %v2158 = vshrl.u32 %v2154, 16
    %v2159 = vshll.u32 %v2155, 16
    %v2160 = vshrl.u32 %v2155, 16
    %vm2161 = vc.u32 %v2153, %v2157
    %v2162 = vsel %vm2161, 1, 0
    %v2163 = vadd.s32 %v2153, %v2157
    %v2164 = vadd.s32 %v2156, %v2162
    %vm2165 = vc.u32 %v2163, %v2159
    %v2166 = vsel %vm2165, 1, 0
    %v2167 = vadd.s32 %v2163, %v2159
    %v2168 = vadd.s32 %v2164, %v2166
    %v2169 = vadd.s32 %v2168, %v2158
    %v2170 = vadd.s32 %v2169, %v2160
    %v2171 = vmul.u32 %v2126, %v2117
    %v2172 = vadd.s32 %v2148, %v2167
    %vm2173 = vc.u32 %v2148, %v2167
    %v2174 = vadd.s32 %v2170, 1
    %v2175 = vsel %vm2173, %v2174, %v2170
    %v2176 = vadd.s32 %v2171, %v2175
    %v2177 = vadd.s32 %v2176, 536870912
    %v2178 = vshrl.u32 %v2177, 30
    %v2179 = vshll.u32 %v2178, 30
    %v2180 = vsub.s32 %v2176, %v2179
    %vm2181 = vcmp.lt.s32.totalorder %v2180, 0
    %v2182 = vsub.s32 0, %v2180
    %v2183 = vsel %vm2181, %v2182, %v2180
    %v2184 = vclz %v2183
    %v2185 = vsub.s32 %v2184, 2
    %vm2186 = vcmp.gt.s32.totalorder 0, %v2185
    %v2187 = vsel %vm2186, 0, %v2185
    %v2188 = vsub.s32 32, %v2187
    %v2189 = vshll.u32 %v2180, %v2187
    %v2190 = vshrl.u32 %v2172, %v2188
    %v2191 = vor.u32 %v2189, %v2190
    %v2192 = vsub.s32 4294967266, %v2187
    %v2193 = vadd.s32 %v2192, 127
    %v2194 = vshll.u32 %v2193, 23
    %v2195 = vor.u32 4788187, %v2194
    %v2196 = vand.u32 2147483647, %v2195
    %v2198 = vcvt.s32.f32 %v2191
    %v2199 = vmul.f32 %v2198, %v2196
    %v2200 = vxor.u32 %v2199, 2147483648
    %v2201 = vsel %vm2080, %v2200, %v2199
    %v2202 = vsub.s32 4, %v2178
    %v2203 = vsel %vm2080, %v2202, %v2178
    %v2204 = vsel %vm2079, %v60, %v2201
    %v2205 = vsel %vm2079, 0, %v2203
    %v2206 = vmul.f32 %v2204, %v2204
    %v2207 = vmul.f32 %v2206, -0.001358992
    %v2208 = vadd.f32 %v2207, 0.041655596
    %v2209 = vmul.f32 %v2206, %v2208
    %v2210 = vadd.f32 %v2209, -0.4999988
    %v2211 = vmul.f32 %v2206, %v2210
    %v2212 = vadd.f32 1.0, %v2211
    %v2213 = vmul.f32 %v2204, %v2204
    %v2214 = vmul.f32 %v2213, -0.00019511016
    %v2215 = vadd.f32 %v2214, 0.008332121
    %v2216 = vmul.f32 %v2213, %v2215
    %v2217 = vadd.f32 %v2216, -0.16666654
    %v2218 = vmul.f32 %v2213, %v2217
    %v2219 = vadd.f32 %v2218, 1.0
    %v2220 = vmul.f32 %v2219, %v2204
    %vm2221 = vweird.f32 %v60
    %v2222 = vadd.s32 %v2205, 3
    %v2223 = vand.u32 %v2222, 3
    %vm2224 = vcmp.lt.s32.totalorder %v2223, 2
    %vm2225 = vcmp.eq.s32.totalorder %v2223, 0
    %v2226 = vxor.u32 %v2220, 2147483648
    %v2227 = vsel %vm2225, %v2212, %v2226
    %vm2228 = vcmp.eq.s32.totalorder %v2223, 2
    %v2229 = vxor.u32 %v2212, 2147483648
    %v2230 = vsel %vm2228, %v2229, %v2220
    %v2231 = vsel %vm2224, %v2227, %v2230
    %v2232 = vsel %vm2221, nan, %v2231
    %v2233 = vand.u32 2147483647, %v61
    %vm2234 = vcmp.le.f32.partialorder %v2233, 0.7853982
    %vm2235 = vcmp.lt.s32.totalorder %v61, 0
    %v2236 = vand.u32 %v61, 2139095040
    %v2237 = vshrl.u32 %v2236, 23
    %v2238 = vsub.s32 %v2237, 127
    %v2239 = vand.u32 2147483647, %v61
    %v2240 = vand.u32 %v2239, 8388607
    %v2241 = vor.u32 %v2240, 8388608
    %v2242 = vsub.s32 0, %v2241
    %v2243 = vadd.s32 %v2238, 1
    %vm2244 = vcmp.gt.s32.totalorder %v2243, 0
    %v2245 = vsel %vm2244, %v2243, 0
    %v2246 = vshrl.u32 %v2245, 5
    %v2247 = vand.u32 %v2245, 31
    %v2248 = vsub.s32 32, %v2247
    %v2249 = vshrl.u32 683565275, %v2248
    %v2250 = vshll.u32 683565275, %v2247
    %v2251 = vshrl.u32 2475754826, %v2248
    %v2252 = vor.u32 %v2250, %v2251
    %v2253 = vshll.u32 2475754826, %v2247
    %v2254 = vshrl.u32 2131351028, %v2248
    %v2255 = vor.u32 %v2253, %v2254
    %v2256 = vshll.u32 2131351028, %v2247
    %v2257 = vshrl.u32 2102212464, %v2248
    %v2258 = vor.u32 %v2256, %v2257
    %v2259 = vshll.u32 2102212464, %v2247
    %v2260 = vshrl.u32 920167782, %v2248
    %v2261 = vor.u32 %v2259, %v2260
    %v2262 = vshll.u32 920167782, %v2247
    %v2263 = vshrl.u32 1326507024, %v2248
    %v2264 = vor.u32 %v2262, %v2263
    %vm2265 = vcmp.lt.s32.totalorder %v2246, 1
    %vm2266 = vcmp.lt.s32.totalorder %v2246, 2
    %vm2267 = vcmp.lt.s32.totalorder %v2246, 3
    %vm2268 = vcmp.lt.s32.totalorder %v2246, 4
    %v2269 = vsel %vm2265, %v2249, %v2252
    %v2270 = vsel %vm2268, %v2258, 2102212464
    %v2271 = vsel %vm2267, %v2255, %v2270
    %v2272 = vsel %vm2266, %v2269, %v2271
    %v2273 = vsel %vm2265, %v2252, %v2255
    %v2274 = vsel %vm2268, %v2261, 920167782
    %v2275 = vsel %vm2267, %v2258, %v2274
    %v2276 = vsel %vm2266, %v2273, %v2275
    %v2277 = vsel %vm2265, %v2255, %v2258
    %v2278 = vsel %vm2268, %v2264, 1326507024
    %v2279 = vsel %vm2267, %v2261, %v2278
    %v2280 = vsel %vm2266, %v2277, %v2279
    %v2281 = vshll.u32 %v2241, 8
    %v2282 = vand.u32 %v2281, 65535
    %v2283 = vshrl.u32 %v2281, 16
    %v2284 = vand.u32 %v2280, 65535
    %v2285 = vshrl.u32 %v2280, 16
    %v2286 = vmul.u32 %v2282, %v2284
    %v2287 = vmul.u32 %v2282, %v2285
    %v2288 = vmul.u32 %v2283, %v2284
    %v2289 = vmul.u32 %v2283, %v2285
    %v2290 = vshll.u32 %v2287, 16
    %v2291 = vshrl.u32 %v2287, 16
    %v2292 = vshll.u32 %v2288, 16
    %v2293 = vshrl.u32 %v2288, 16
    %vm2294 = vc.u32 %v2286, %v2290
    %v2295 = vsel %vm2294, 1, 0
    %v2296 = vadd.s32 %v2286, %v2290
    %v2297 = vadd.s32 %v2289, %v2295
    %vm2298 = vc.u32 %v2296, %v2292
    %v2299 = vsel %vm2298, 1, 0
    %v2300 = vadd.s32 %v2296, %v2292
    %v2301 = vadd.s32 %v2297, %v2299
    %v2302 = vadd.s32 %v2301, %v2291
    %v2303 = vadd.s32 %v2302, %v2293
    %v2304 = vand.u32 %v2281, 65535
    %v2305 = vshrl.u32 %v2281, 16
    %v2306 = vand.u32 %v2276, 65535
    %v2307 = vshrl.u32 %v2276, 16
    %v2308 = vmul.u32 %v2304, %v2306
    %v2309 = vmul.u32 %v2304, %v2307
    %v2310 = vmul.u32 %v2305, %v2306
    %v2311 = vmul.u32 %v2305, %v2307
    %v2312 = vshll.u32 %v2309, 16
    %v2313 = vshrl.u32 %v2309, 16
    %v2314 = vshll.u32 %v2310, 16
    %v2315 = vshrl.u32 %v2310, 16
    %vm2316 = vc.u32 %v2308, %v2312
    %v2317 = vsel %vm2316, 1, 0
    %v2318 = vadd.s32 %v2308, %v2312
    %v2319 = vadd.s32 %v2311, %v2317
    %vm2320 = vc.u32 %v2318, %v2314
    %v2321 = vsel %vm2320, 1, 0
    %v2322 = vadd.s32 %v2318, %v2314
    %v2323 = vadd.s32 %v2319, %v2321
    %v2324 = vadd.s32 %v2323, %v2313
    %v2325 = vadd.s32 %v2324, %v2315
    %v2326 = vmul.u32 %v2281, %v2272
    %v2327 = vadd.s32 %v2303, %v2322
    %vm2328 = vc.u32 %v2303, %v2322
    %v2329 = vadd.s32 %v2325, 1
    %v2330 = vsel %vm2328, %v2329, %v2325
    %v2331 = vadd.s32 %v2326, %v2330
    %v2332 = vadd.s32 %v2331, 536870912
    %v2333 = vshrl.u32 %v2332, 30
    %v2334 = vshll.u32 %v2333, 30
    %v2335 = vsub.s32 %v2331, %v2334
    %vm2336 = vcmp.lt.s32.totalorder %v2335, 0
    %v2337 = vsub.s32 0, %v2335
    %v2338 = vsel %vm2336, %v2337, %v2335
    %v2339 = vclz %v2338
    %v2340 = vsub.s32 %v2339, 2
    %vm2341 = vcmp.gt.s32.totalorder 0, %v2340
    %v2342 = vsel %vm2341, 0, %v2340
    %v2343 = vsub.s32 32, %v2342
    %v2344 = vshll.u32 %v2335, %v2342
    %v2345 = vshrl.u32 %v2327, %v2343
    %v2346 = vor.u32 %v2344, %v2345
    %v2347 = vsub.s32 4294967266, %v2342
    %v2348 = vadd.s32 %v2347, 127
    %v2349 = vshll.u32 %v2348, 23
    %v2350 = vor.u32 4788187, %v2349
    %v2351 = vand.u32 2147483647, %v2350
    %v2353 = vcvt.s32.f32 %v2346
    %v2354 = vmul.f32 %v2353, %v2351
    %v2355 = vxor.u32 %v2354, 2147483648
    %v2356 = vsel %vm2235, %v2355, %v2354
    %v2357 = vsub.s32 4, %v2333
    %v2358 = vsel %vm2235, %v2357, %v2333
    %v2359 = vsel %vm2234, %v61, %v2356
    %v2360 = vsel %vm2234, 0, %v2358
    %v2361 = vmul.f32 %v2359, %v2359
    %v2362 = vmul.f32 %v2361, -0.001358992
    %v2363 = vadd.f32 %v2362, 0.041655596
    %v2364 = vmul.f32 %v2361, %v2363
    %v2365 = vadd.f32 %v2364, -0.4999988
    %v2366 = vmul.f32 %v2361, %v2365
    %v2367 = vadd.f32 1.0, %v2366
    %v2368 = vmul.f32 %v2359, %v2359
    %v2369 = vmul.f32 %v2368, -0.00019511016
    %v2370 = vadd.f32 %v2369, 0.008332121
    %v2371 = vmul.f32 %v2368, %v2370
    %v2372 = vadd.f32 %v2371, -0.16666654
    %v2373 = vmul.f32 %v2368, %v2372
    %v2374 = vadd.f32 %v2373, 1.0
    %v2375 = vmul.f32 %v2374, %v2359
    %vm2376 = vweird.f32 %v61
    %v2377 = vadd.s32 %v2360, 3
    %v2378 = vand.u32 %v2377, 3
    %vm2379 = vcmp.lt.s32.totalorder %v2378, 2
    %vm2380 = vcmp.eq.s32.totalorder %v2378, 0
    %v2381 = vxor.u32 %v2375, 2147483648
    %v2382 = vsel %vm2380, %v2367, %v2381
    %vm2383 = vcmp.eq.s32.totalorder %v2378, 2
    %v2384 = vxor.u32 %v2367, 2147483648
    %v2385 = vsel %vm2383, %v2384, %v2375
    %v2386 = vsel %vm2379, %v2382, %v2385
    %v2387 = vsel %vm2376, nan, %v2386
    %v2388 = vand.u32 2147483647, %v62
    %vm2389 = vcmp.le.f32.partialorder %v2388, 0.7853982
    %vm2390 = vcmp.lt.s32.totalorder %v62, 0
    %v2391 = vand.u32 %v62, 2139095040
    %v2392 = vshrl.u32 %v2391, 23
    %v2393 = vsub.s32 %v2392, 127
    %v2394 = vand.u32 2147483647, %v62
    %v2395 = vand.u32 %v2394, 8388607
    %v2396 = vor.u32 %v2395, 8388608
    %v2397 = vsub.s32 0, %v2396
    %v2398 = vadd.s32 %v2393, 1
    %vm2399 = vcmp.gt.s32.totalorder %v2398, 0
    %v2400 = vsel %vm2399, %v2398, 0
    %v2401 = vshrl.u32 %v2400, 5
    %v2402 = vand.u32 %v2400, 31
    %v2403 = vsub.s32 32, %v2402
    %v2404 = vshrl.u32 683565275, %v2403
    %v2405 = vshll.u32 683565275, %v2402
    %v2406 = vshrl.u32 2475754826, %v2403
    %v2407 = vor.u32 %v2405, %v2406
    %v2408 = vshll.u32 2475754826, %v2402
    %v2409 = vshrl.u32 2131351028, %v2403
    %v2410 = vor.u32 %v2408, %v2409
    %v2411 = vshll.u32 2131351028, %v2402
    %v2412 = vshrl.u32 2102212464, %v2403
    %v2413 = vor.u32 %v2411, %v2412
    %v2414 = vshll.u32 2102212464, %v2402
    %v2415 = vshrl.u32 920167782, %v2403
    %v2416 = vor.u32 %v2414, %v2415
    %v2417 = vshll.u32 920167782, %v2402
    %v2418 = vshrl.u32 1326507024, %v2403
    %v2419 = vor.u32 %v2417, %v2418
    %vm2420 = vcmp.lt.s32.totalorder %v2401, 1
    %vm2421 = vcmp.lt.s32.totalorder %v2401, 2
    %vm2422 = vcmp.lt.s32.totalorder %v2401, 3
    %vm2423 = vcmp.lt.s32.totalorder %v2401, 4
    %v2424 = vsel %vm2420, %v2404, %v2407
    %v2425 = vsel %vm2423, %v2413, 2102212464
    %v2426 = vsel %vm2422, %v2410, %v2425
    %v2427 = vsel %vm2421, %v2424, %v2426
    %v2428 = vsel %vm2420, %v2407, %v2410
    %v2429 = vsel %vm2423, %v2416, 920167782
    %v2430 = vsel %vm2422, %v2413, %v2429
    %v2431 = vsel %vm2421, %v2428, %v2430
    %v2432 = vsel %vm2420, %v2410, %v2413
    %v2433 = vsel %vm2423, %v2419, 1326507024
    %v2434 = vsel %vm2422, %v2416, %v2433
    %v2435 = vsel %vm2421, %v2432, %v2434
    %v2436 = vshll.u32 %v2396, 8
    %v2437 = vand.u32 %v2436, 65535
    %v2438 = vshrl.u32 %v2436, 16
    %v2439 = vand.u32 %v2435, 65535
    %v2440 = vshrl.u32 %v2435, 16
    %v2441 = vmul.u32 %v2437, %v2439
    %v2442 = vmul.u32 %v2437, %v2440
    %v2443 = vmul.u32 %v2438, %v2439
    %v2444 = vmul.u32 %v2438, %v2440
    %v2445 = vshll.u32 %v2442, 16
    %v2446 = vshrl.u32 %v2442, 16
    %v2447 = vshll.u32 %v2443, 16
    %v2448 = vshrl.u32 %v2443, 16
    %vm2449 = vc.u32 %v2441, %v2445
    %v2450 = vsel %vm2449, 1, 0
    %v2451 = vadd.s32 %v2441, %v2445
    %v2452 = vadd.s32 %v2444, %v2450
    %vm2453 = vc.u32 %v2451, %v2447
    %v2454 = vsel %vm2453, 1, 0
    %v2455 = vadd.s32 %v2451, %v2447
    %v2456 = vadd.s32 %v2452, %v2454
    %v2457 = vadd.s32 %v2456, %v2446
    %v2458 = vadd.s32 %v2457, %v2448
    %v2459 = vand.u32 %v2436, 65535
    %v2460 = vshrl.u32 %v2436, 16
    %v2461 = vand.u32 %v2431, 65535
    %v2462 = vshrl.u32 %v2431, 16
    %v2463 = vmul.u32 %v2459, %v2461
    %v2464 = vmul.u32 %v2459, %v2462
    %v2465 = vmul.u32 %v2460, %v2461
    %v2466 = vmul.u32 %v2460, %v2462
    %v2467 = vshll.u32 %v2464, 16
    %v2468 = vshrl.u32 %v2464, 16
    %v2469 = vshll.u32 %v2465, 16
    %v2470 = vshrl.u32 %v2465, 16
    %vm2471 = vc.u32 %v2463, %v2467
    %v2472 = vsel %vm2471, 1, 0
    %v2473 = vadd.s32 %v2463, %v2467
    %v2474 = vadd.s32 %v2466, %v2472
    %vm2475 = vc.u32 %v2473, %v2469
    %v2476 = vsel %vm2475, 1, 0
    %v2477 = vadd.s32 %v2473, %v2469
    %v2478 = vadd.s32 %v2474, %v2476
    %v2479 = vadd.s32 %v2478, %v2468
    %v2480 = vadd.s32 %v2479, %v2470
    %v2481 = vmul.u32 %v2436, %v2427
    %v2482 = vadd.s32 %v2458, %v2477
    %vm2483 = vc.u32 %v2458, %v2477
    %v2484 = vadd.s32 %v2480, 1
    %v2485 = vsel %vm2483, %v2484, %v2480
    %v2486 = vadd.s32 %v2481, %v2485
    %v2487 = vadd.s32 %v2486, 536870912
    %v2488 = vshrl.u32 %v2487, 30
    %v2489 = vshll.u32 %v2488, 30
    %v2490 = vsub.s32 %v2486, %v2489
    %vm2491 = vcmp.lt.s32.totalorder %v2490, 0
    %v2492 = vsub.s32 0, %v2490
    %v2493 = vsel %vm2491, %v2492, %v2490
    %v2494 = vclz %v2493
    %v2495 = vsub.s32 %v2494, 2
    %vm2496 = vcmp.gt.s32.totalorder 0, %v2495
    %v2497 = vsel %vm2496, 0, %v2495
    %v2498 = vsub.s32 32, %v2497
    %v2499 = vshll.u32 %v2490, %v2497
    %v2500 = vshrl.u32 %v2482, %v2498
    %v2501 = vor.u32 %v2499, %v2500
    %v2502 = vsub.s32 4294967266, %v2497
    %v2503 = vadd.s32 %v2502, 127
    %v2504 = vshll.u32 %v2503, 23
    %v2505 = vor.u32 4788187, %v2504
    %v2506 = vand.u32 2147483647, %v2505
    %v2508 = vcvt.s32.f32 %v2501
    %v2509 = vmul.f32 %v2508, %v2506
    %v2510 = vxor.u32 %v2509, 2147483648
    %v2511 = vsel %vm2390, %v2510, %v2509
    %v2512 = vsub.s32 4, %v2488
    %v2513 = vsel %vm2390, %v2512, %v2488
    %v2514 = vsel %vm2389, %v62, %v2511
    %v2515 = vsel %vm2389, 0, %v2513
    %v2516 = vmul.f32 %v2514, %v2514
    %v2517 = vmul.f32 %v2516, -0.001358992
    %v2518 = vadd.f32 %v2517, 0.041655596
    %v2519 = vmul.f32 %v2516, %v2518
    %v2520 = vadd.f32 %v2519, -0.4999988
    %v2521 = vmul.f32 %v2516, %v2520
    %v2522 = vadd.f32 1.0, %v2521
    %v2523 = vmul.f32 %v2514, %v2514
    %v2524 = vmul.f32 %v2523, -0.00019511016
    %v2525 = vadd.f32 %v2524, 0.008332121
    %v2526 = vmul.f32 %v2523, %v2525
    %v2527 = vadd.f32 %v2526, -0.16666654
    %v2528 = vmul.f32 %v2523, %v2527
    %v2529 = vadd.f32 %v2528, 1.0
    %v2530 = vmul.f32 %v2529, %v2514
    %vm2531 = vweird.f32 %v62
    %v2532 = vadd.s32 %v2515, 3
    %v2533 = vand.u32 %v2532, 3
    %vm2534 = vcmp.lt.s32.totalorder %v2533, 2
    %vm2535 = vcmp.eq.s32.totalorder %v2533, 0
    %v2536 = vxor.u32 %v2530, 2147483648
    %v2537 = vsel %vm2535, %v2522, %v2536
    %vm2538 = vcmp.eq.s32.totalorder %v2533, 2
    %v2539 = vxor.u32 %v2522, 2147483648
    %v2540 = vsel %vm2538, %v2539, %v2530
    %v2541 = vsel %vm2534, %v2537, %v2540
    %v2542 = vsel %vm2531, nan, %v2541
    %vm2543 = vcmask 130048
    %2544 = vst.msk [vmem:[#allocation6] sm:$0xff] %vm2543, %v217
    %2545 = vst.msk [vmem:[#allocation6 + $0x8] sm:$0xff] %vm2543, %v372
    %2546 = vst.msk [vmem:[#allocation6 + $0x10] sm:$0xff] %vm2543, %v527
    %2547 = vst.msk [vmem:[#allocation6 + $0x18] sm:$0xff] %vm2543, %v682
    %2548 = vst.msk [vmem:[#allocation6 + $0x20] sm:$0xff] %vm2543, %v837
    %2549 = vst.msk [vmem:[#allocation6 + $0x28] sm:$0xff] %vm2543, %v992
    %2550 = vst.msk [vmem:[#allocation6 + $0x30] sm:$0xff] %vm2543, %v1147
    %2551 = vst.msk [vmem:[#allocation6 + $0x38] sm:$0xff] %vm2543, %v1302
    %2552 = vst.msk [vmem:[#allocation6 + $0x40] sm:$0xff] %vm2543, %v1457
    %2553 = vst.msk [vmem:[#allocation6 + $0x48] sm:$0xff] %vm2543, %v1612
    %2554 = vst.msk [vmem:[#allocation6 + $0x50] sm:$0xff] %vm2543, %v1767
    %2555 = vst.msk [vmem:[#allocation6 + $0x58] sm:$0xff] %vm2543, %v1922
    %2556 = vst.msk [vmem:[#allocation6 + $0x60] sm:$0xff] %vm2543, %v2077
    %2557 = vst.msk [vmem:[#allocation6 + $0x68] sm:$0xff] %vm2543, %v2232
    %2558 = vst.msk [vmem:[#allocation6 + $0x70] sm:$0xff] %vm2543, %v2387
    %2559 = vst.msk [vmem:[#allocation6 + $0x78] sm:$0xff] %vm2543, %v2542
    // Predicated region
    $region14: #{tpu_custom_call.1} parent=1 // pred_check
      _
    $region15: #{tpu_custom_call.1} parent=1 // pred_check_branch
      %2561 = sbr.rel (0) target = $region17
    $region16: #{tpu_custom_call.1} parent=1 // pred_region
      %2563 = vsyncadd [#allocation5], 0
      %s2564 = sshll.u32 [#allocation6], 4
      %s2565 = int_to_ptr.vmem [resolvable:$true] %s2564
      %s2566 = sshll.u32 %s2, 4
      %s2567 = int_to_ptr.hbm [resolvable:$true] %s2566
      %2572 = dma.vmem_to_hbm [thread:$0]  %s2565, 2048, %s2567, [#allocation5], 128, 128, 8
    $region17: #{tpu_custom_call.1} parent=1 // pred_fallthru
      _
    // Predicated region
    $region18: #{tpu_custom_call.1} parent=1 // pred_check
      _
    $region19: #{tpu_custom_call.1} parent=1 // pred_check_branch
      %2574 = sbr.rel (0) target = $region21
    $region20: #{tpu_custom_call.1} parent=1 // pred_region
      %2576 = dma.done [#allocation5], 2048
    $region21: #{tpu_custom_call.1} parent=1 // pred_fallthru
      _
    %2577 = vsyncpa [#allocation4], 1
    %2578 = vsyncpa [#allocation5], 1

</llo_original>
